<compile_context>
chip_gen: v5e
topology: v5e:2x2
jax: 0.10.0
libtpu: 0.0.40
codegen_flags: <defaults>
</compile_context>

<pallas_src>
import functools

import jax
import jax.numpy as jnp
from jax import lax
from jax.experimental import pallas as pl
from jax.experimental.pallas import tpu as pltpu

# MoCo hyper-parameters (small synthetic sizes; K % batch == 0 as in the torch assert)
DIM = 128        # feature dim
KQ = 256         # queue length K
M_MOM = 0.999    # momentum m
TEMP = 0.07      # temperature T

BATCH = 8
C, H, W = 4, 8, 8
D_IN = C * H * W  # flattened encoder input


def _l2_normalize(x):
    # torch F.normalize(dim=1): x / max(||x||, 1e-12)  ==  x * rsqrt(max(sum(x^2), 1e-24))
    ssq = jnp.sum(x * x, axis=1, keepdims=True)
    return x * lax.rsqrt(jnp.maximum(ssq, 1e-24))


# -----------------------------------------------------------------------------
# Fused kernel: momentum update + encode/normalize q,k + logits + queue enqueue
# -----------------------------------------------------------------------------
def _moco_fused_kernel(ptr_ref,                       # SMEM: (1,) int32 queue ptr
                       xq_ref, xk_ref,                # (N, D_IN)
                       wq_ref, bq_ref,                # (D_IN, DIM), (1, DIM)
                       wk_ref, bk_ref,                # (D_IN, DIM), (1, DIM)
                       queue_ref,                     # (DIM, K)
                       wk_out_ref, bk_out_ref,        # updated key-encoder params
                       logits_ref,                    # (N, 1+K), already / T
                       queue_out_ref,                 # (DIM, K), aliased with queue_ref
                       *, m, inv_t):
    n = xq_ref.shape[0]
    kq = queue_ref.shape[1]

    # ---- momentum update of the key encoder (stays resident in VMEM/vregs) ----
    w_k = wk_ref[...] * m + wq_ref[...] * (1.0 - m)
    b_k = bk_ref[...] * m + bq_ref[...] * (1.0 - m)
    wk_out_ref[...] = w_k
    bk_out_ref[...] = b_k

    # ---- q = normalize(encoder_q(im_q)) ----
    feat_q = jnp.dot(xq_ref[...], wq_ref[...],
                     preferred_element_type=jnp.float32) + bq_ref[...]
    q = _l2_normalize(feat_q)

    # ---- k = normalize(encoder_k(im_k)) using the just-updated weights ----
    feat_k = jnp.dot(xk_ref[...], w_k,
                     preferred_element_type=jnp.float32) + b_k
    k = _l2_normalize(feat_k)

    # ---- logits: l_pos at column 0, l_neg at columns 1..K, scaled by 1/T ----
    l_pos = jnp.sum(q * k, axis=1, keepdims=True)                          # (N, 1)
    l_neg = jnp.dot(q, queue_ref[...],
                    preferred_element_type=jnp.float32)                    # (N, K)
    # Shift l_neg right by one column with a (K, 1+K) shift matrix on the MXU
    # (avoids unaligned lane concat / partial stores); then select column 0.
    srow = lax.broadcasted_iota(jnp.int32, (kq, kq + 1), 0)
    scol = lax.broadcasted_iota(jnp.int32, (kq, kq + 1), 1)
    shift = (scol == srow + 1).astype(jnp.float32)                         # S[j, j+1] = 1
    l_neg_sh = jnp.dot(l_neg, shift,
                       preferred_element_type=jnp.float32)                 # (N, 1+K)
    col = lax.broadcasted_iota(jnp.int32, (n, kq + 1), 1)
    logits = jnp.where(col == 0, jnp.broadcast_to(l_pos, (n, kq + 1)), l_neg_sh)
    logits_ref[...] = logits * inv_t                                       # lane-dense store

    # ---- dequeue & enqueue: queue[:, ptr:ptr+N] = k.T (no wrap; K % N == 0) ----
    ptr = ptr_ref[0]
    orow = lax.broadcasted_iota(jnp.int32, (n, kq), 0)
    ocol = lax.broadcasted_iota(jnp.int32, (n, kq), 1)
    onehot = (ocol == orow + ptr).astype(jnp.float32)                      # (N, K)
    # scattered[d, c] = sum_n k[n, d] * onehot[n, c]  -> k.T placed at cols [ptr, ptr+N)
    scattered = lax.dot_general(k, onehot, (((0,), (0,)), ((), ())),
                                preferred_element_type=jnp.float32)        # (DIM, K)
    qcol = lax.broadcasted_iota(jnp.int32, queue_ref.shape, 1)
    enq_mask = (qcol >= ptr) & (qcol < ptr + n)
    queue_out_ref[...] = jnp.where(enq_mask, scattered, queue_ref[...])


# -----------------------------------------------------------------------------
# Functional MoCo forward (returns updated key-encoder params / queue / ptr)
# -----------------------------------------------------------------------------
@jax.jit
def moco_forward(params_q, params_k, queue, queue_ptr, im_q, im_k):
    n = im_q.shape[0]
    x_q = im_q.reshape(n, -1).astype(jnp.float32)   # flatten NCHW
    x_k = im_k.reshape(n, -1).astype(jnp.float32)
    d_in = x_q.shape[1]
    dim = params_q["w"].shape[1]
    kq = queue.shape[1]

    ptr = jnp.reshape(jnp.asarray(queue_ptr, jnp.int32), (1,))

    in_specs = ([pl.BlockSpec(memory_space=pltpu.MemorySpace.SMEM)]
                + [pl.BlockSpec(memory_space=pltpu.MemorySpace.VMEM) for _ in range(7)])
    out_specs = tuple(pl.BlockSpec(memory_space=pltpu.MemorySpace.VMEM) for _ in range(4))

    new_w_k, new_b_k, logits, new_queue = pl.pallas_call(
        functools.partial(_moco_fused_kernel, m=M_MOM, inv_t=1.0 / TEMP),
        out_shape=(
            jax.ShapeDtypeStruct((d_in, dim), jnp.float32),   # updated w_k
            jax.ShapeDtypeStruct((1, dim), jnp.float32),      # updated b_k
            jax.ShapeDtypeStruct((n, 1 + kq), jnp.float32),   # logits (already / T)
            jax.ShapeDtypeStruct((dim, kq), jnp.float32),     # updated queue
        ),
        in_specs=in_specs,
        out_specs=out_specs,
        input_output_aliases={7: 3},   # queue input buffer -> updated-queue output
    )(ptr, x_q, x_k,
      params_q["w"], params_q["b"].reshape(1, dim),
      params_k["w"], params_k["b"].reshape(1, dim),
      queue)

    new_params_k = {"w": new_w_k, "b": new_b_k.reshape(dim)}
    labels = jnp.zeros((n,), dtype=jnp.int32)  # torch uses int64; int32 under JAX defaults
    new_ptr = (queue_ptr + n) % kq
    return (logits, labels), new_params_k, new_queue, new_ptr


# -----------------------------------------------------------------------------
# Pure-JAX reference (same math) for a sanity check
# -----------------------------------------------------------------------------
def _reference_forward(params_q, params_k, queue, queue_ptr, im_q, im_k):
    n = im_q.shape[0]
    xq = im_q.reshape(n, -1)
    xk = im_k.reshape(n, -1)
    w_k = params_k["w"] * M_MOM + params_q["w"] * (1.0 - M_MOM)
    b_k = params_k["b"] * M_MOM + params_q["b"] * (1.0 - M_MOM)

    def norm(x):
        return x / jnp.maximum(jnp.linalg.norm(x, axis=1, keepdims=True), 1e-12)

    hi = jax.lax.Precision.HIGHEST
    q = norm(jnp.dot(xq, params_q["w"], precision=hi) + params_q["b"])
    k = norm(jnp.dot(xk, w_k, precision=hi) + b_k)
    l_pos = jnp.sum(q * k, axis=1, keepdims=True)
    l_neg = jnp.dot(q, queue, precision=hi)
    logits = jnp.concatenate([l_pos, l_neg], axis=1) / TEMP
    new_queue = jax.lax.dynamic_update_slice(queue, k.T, (0, queue_ptr))
    return logits, w_k, b_k, new_queue


if __name__ == "__main__":
    key = jax.random.PRNGKey(0)
    k_w, k_b, k_queue, k_imq, k_imk = jax.random.split(key, 5)

    # deterministic encoder_q params; encoder_k initialized as an exact copy
    w_q = jax.random.normal(k_w, (D_IN, DIM), dtype=jnp.float32) * 0.02
    b_q = jax.random.normal(k_b, (DIM,), dtype=jnp.float32) * 0.01
    params_q = {"w": w_q, "b": b_q}
    params_k = {"w": w_q, "b": b_q}  # param_k.data.copy_(param_q.data)

    # queue buffer: randn(dim, K) normalized along dim=0
    queue = jax.random.normal(k_queue, (DIM, KQ), dtype=jnp.float32)
    queue = queue / jnp.maximum(
        jnp.sqrt(jnp.sum(queue * queue, axis=0, keepdims=True)), 1e-12)
    queue_ptr = jnp.int32(0)

    im_q = jax.random.normal(k_imq, (BATCH, C, H, W), dtype=jnp.float32)
    im_k = jax.random.normal(k_imk, (BATCH, C, H, W), dtype=jnp.float32)

    (logits, labels), new_params_k, new_queue, new_ptr = moco_forward(
        params_q, params_k, queue, queue_ptr, im_q, im_k)
    jax.block_until_ready((logits, labels, new_params_k, new_queue, new_ptr))

    # shape + numerical sanity checks against the plain-JAX reference
    ref_logits, ref_wk, ref_bk, ref_queue = _reference_forward(
        params_q, params_k, queue, queue_ptr, im_q, im_k)

    assert logits.shape == (BATCH, 1 + KQ)
    assert labels.shape == (BATCH,)
    assert new_queue.shape == (DIM, KQ)
    assert bool(jnp.allclose(new_params_k["w"], ref_wk, atol=1e-5, rtol=1e-5))
    assert bool(jnp.allclose(new_params_k["b"], ref_bk, atol=1e-5, rtol=1e-5))
    assert bool(jnp.allclose(logits, ref_logits, atol=5e-2, rtol=1e-2))
    assert bool(jnp.allclose(new_queue, ref_queue, atol=1e-2, rtol=1e-2))
    assert int(new_ptr) == (0 + BATCH) % KQ
    print("KERNEL_OK")
</pallas_src>

<mosaic_0001>
module attributes {stable_mosaic.version = 11 : i64} {
  func.func @_moco_fused_kernel(%arg0: memref<1xi32, #tpu.memory_space<smem>>, %arg1: memref<8x256xf32, #tpu.memory_space<vmem>>, %arg2: memref<8x256xf32, #tpu.memory_space<vmem>>, %arg3: memref<256x128xf32, #tpu.memory_space<vmem>>, %arg4: memref<1x128xf32, #tpu.memory_space<vmem>>, %arg5: memref<256x128xf32, #tpu.memory_space<vmem>>, %arg6: memref<1x128xf32, #tpu.memory_space<vmem>>, %arg7: memref<128x256xf32, #tpu.memory_space<vmem>>, %arg8: memref<256x128xf32, #tpu.memory_space<vmem>>, %arg9: memref<1x128xf32, #tpu.memory_space<vmem>>, %arg10: memref<8x257xf32, #tpu.memory_space<vmem>>, %arg11: memref<128x256xf32, #tpu.memory_space<vmem>>) attributes {dimension_semantics = [], scalar_prefetch = 0 : i64, scratch_operands = 0 : i64, tpu.core_type = #tpu.core_type<tc>} {
    %c0 = arith.constant 0 : index
    %c0_0 = arith.constant 0 : index
    %0 = vector.load %arg5[%c0, %c0_0] : memref<256x128xf32, #tpu.memory_space<vmem>>, vector<256x128xf32>
    %cst = arith.constant 9.990000e-01 : f32
    %1 = vector.broadcast %cst : f32 to vector<256x128xf32>
    %2 = arith.mulf %0, %1 : vector<256x128xf32>
    %c0_1 = arith.constant 0 : index
    %c0_2 = arith.constant 0 : index
    %3 = vector.load %arg3[%c0_1, %c0_2] : memref<256x128xf32, #tpu.memory_space<vmem>>, vector<256x128xf32>
    %cst_3 = arith.constant 1.000000e-03 : f32
    %4 = vector.broadcast %cst_3 : f32 to vector<256x128xf32>
    %5 = arith.mulf %3, %4 : vector<256x128xf32>
    %6 = arith.addf %2, %5 : vector<256x128xf32>
    %c0_4 = arith.constant 0 : index
    %c0_5 = arith.constant 0 : index
    %7 = vector.load %arg6[%c0_4, %c0_5] : memref<1x128xf32, #tpu.memory_space<vmem>>, vector<1x128xf32>
    %cst_6 = arith.constant 9.990000e-01 : f32
    %8 = vector.broadcast %cst_6 : f32 to vector<1x128xf32>
    %9 = arith.mulf %7, %8 : vector<1x128xf32>
    %c0_7 = arith.constant 0 : index
    %c0_8 = arith.constant 0 : index
    %10 = vector.load %arg4[%c0_7, %c0_8] : memref<1x128xf32, #tpu.memory_space<vmem>>, vector<1x128xf32>
    %cst_9 = arith.constant 1.000000e-03 : f32
    %11 = vector.broadcast %cst_9 : f32 to vector<1x128xf32>
    %12 = arith.mulf %10, %11 : vector<1x128xf32>
    %13 = arith.addf %9, %12 : vector<1x128xf32>
    %c0_10 = arith.constant 0 : index
    %c0_11 = arith.constant 0 : index
    %14 = vector.load %arg8[%c0_10, %c0_11] : memref<256x128xf32, #tpu.memory_space<vmem>>, vector<256x128xf32>
    tpu.vector_store %arg8[%c0_10, %c0_11], %6 {strides = array<i32>} : memref<256x128xf32, #tpu.memory_space<vmem>>, vector<256x128xf32>,
    %c0_12 = arith.constant 0 : index
    %c0_13 = arith.constant 0 : index
    %15 = vector.load %arg9[%c0_12, %c0_13] : memref<1x128xf32, #tpu.memory_space<vmem>>, vector<1x128xf32>
    tpu.vector_store %arg9[%c0_12, %c0_13], %13 {strides = array<i32>} : memref<1x128xf32, #tpu.memory_space<vmem>>, vector<1x128xf32>,
    %c0_14 = arith.constant 0 : index
    %c0_15 = arith.constant 0 : index
    %16 = vector.load %arg1[%c0_14, %c0_15] : memref<8x256xf32, #tpu.memory_space<vmem>>, vector<8x256xf32>
    %c0_16 = arith.constant 0 : index
    %c0_17 = arith.constant 0 : index
    %17 = vector.load %arg3[%c0_16, %c0_17] : memref<256x128xf32, #tpu.memory_space<vmem>>, vector<256x128xf32>
    %cst_18 = arith.constant dense<0.000000e+00> : vector<8x128xf32>
    %18 = tpu.matmul %16, %17, %cst_18 {dimension_numbers = #tpu.dot_dimension_numbers<[1], [0], [0], [1], [0, 0, 1, 1], [], []>} : vector<8x256xf32>, vector<256x128xf32>, vector<8x128xf32> -> vector<8x128xf32>
    %c0_19 = arith.constant 0 : index
    %c0_20 = arith.constant 0 : index
    %19 = vector.load %arg4[%c0_19, %c0_20] : memref<1x128xf32, #tpu.memory_space<vmem>>, vector<1x128xf32>
    %20 = vector.broadcast %19 : vector<1x128xf32> to vector<8x128xf32>
    %21 = arith.addf %18, %20 : vector<8x128xf32>
    %22 = arith.mulf %21, %21 : vector<8x128xf32>
    %cst_21 = arith.constant dense<0.000000e+00> : vector<8xf32>
    %23 = vector.multi_reduction <add>, %22, %cst_21 [1] : vector<8x128xf32> to vector<8xf32>
    %24 = vector.shape_cast %23 : vector<8xf32> to vector<8x1xf32>
    %cst_22 = arith.constant 1.000000e-24 : f32
    %25 = vector.broadcast %cst_22 : f32 to vector<8x1xf32>
    %26 = arith.maximumf %24, %25 : vector<8x1xf32>
    %27 = math.rsqrt %26 : vector<8x1xf32>
    %28 = vector.broadcast %27 : vector<8x1xf32> to vector<8x128xf32>
    %29 = arith.mulf %21, %28 : vector<8x128xf32>
    %c0_23 = arith.constant 0 : index
    %c0_24 = arith.constant 0 : index
    %30 = vector.load %arg2[%c0_23, %c0_24] : memref<8x256xf32, #tpu.memory_space<vmem>>, vector<8x256xf32>
    %cst_25 = arith.constant dense<0.000000e+00> : vector<8x128xf32>
    %31 = tpu.matmul %30, %6, %cst_25 {dimension_numbers = #tpu.dot_dimension_numbers<[1], [0], [0], [1], [0, 0, 1, 1], [], []>} : vector<8x256xf32>, vector<256x128xf32>, vector<8x128xf32> -> vector<8x128xf32>
    %32 = vector.broadcast %13 : vector<1x128xf32> to vector<8x128xf32>
    %33 = arith.addf %31, %32 : vector<8x128xf32>
    %34 = arith.mulf %33, %33 : vector<8x128xf32>
    %cst_26 = arith.constant dense<0.000000e+00> : vector<8xf32>
    %35 = vector.multi_reduction <add>, %34, %cst_26 [1] : vector<8x128xf32> to vector<8xf32>
    %36 = vector.shape_cast %35 : vector<8xf32> to vector<8x1xf32>
    %cst_27 = arith.constant 1.000000e-24 : f32
    %37 = vector.broadcast %cst_27 : f32 to vector<8x1xf32>
    %38 = arith.maximumf %36, %37 : vector<8x1xf32>
    %39 = math.rsqrt %38 : vector<8x1xf32>
    %40 = vector.broadcast %39 : vector<8x1xf32> to vector<8x128xf32>
    %41 = arith.mulf %33, %40 : vector<8x128xf32>
    %42 = arith.mulf %29, %41 : vector<8x128xf32>
    %cst_28 = arith.constant dense<0.000000e+00> : vector<8xf32>
    %43 = vector.multi_reduction <add>, %42, %cst_28 [1] : vector<8x128xf32> to vector<8xf32>
    %44 = vector.shape_cast %43 : vector<8xf32> to vector<8x1xf32>
    %c0_29 = arith.constant 0 : index
    %c0_30 = arith.constant 0 : index
    %45 = vector.load %arg7[%c0_29, %c0_30] : memref<128x256xf32, #tpu.memory_space<vmem>>, vector<128x256xf32>
    %cst_31 = arith.constant dense<0.000000e+00> : vector<8x256xf32>
    %46 = tpu.matmul %29, %45, %cst_31 {dimension_numbers = #tpu.dot_dimension_numbers<[1], [0], [0], [1], [0, 0, 1, 1], [], []>} : vector<8x128xf32>, vector<128x256xf32>, vector<8x256xf32> -> vector<8x256xf32>
    %47 = tpu.iota {dimensions = array<i32: 0>} : vector<256x257xi32>
    %48 = tpu.iota {dimensions = array<i32: 1>} : vector<256x257xi32>
    %c1_i32 = arith.constant 1 : i32
    %49 = vector.broadcast %c1_i32 : i32 to vector<256x257xi32>
    %50 = arith.addi %47, %49 : vector<256x257xi32>
    %51 = arith.cmpi eq, %48, %50 : vector<256x257xi32>
    %52 = arith.extui %51 : vector<256x257xi1> to vector<256x257xi32>
    %53 = arith.sitofp %52 : vector<256x257xi32> to vector<256x257xf32>
    %cst_32 = arith.constant dense<0.000000e+00> : vector<8x257xf32>
    %54 = tpu.matmul %46, %53, %cst_32 {dimension_numbers = #tpu.dot_dimension_numbers<[1], [0], [0], [1], [0, 0, 1, 1], [], []>} : vector<8x256xf32>, vector<256x257xf32>, vector<8x257xf32> -> vector<8x257xf32>
    %55 = tpu.iota {dimensions = array<i32: 1>} : vector<8x257xi32>
    %c0_i32 = arith.constant 0 : i32
    %56 = vector.broadcast %c0_i32 : i32 to vector<8x257xi32>
    %57 = arith.cmpi eq, %55, %56 : vector<8x257xi32>
    %58 = vector.shape_cast %44 : vector<8x1xf32> to vector<8x1xf32>
    %59 = vector.broadcast %58 : vector<8x1xf32> to vector<8x257xf32>
    %60 = arith.select %57, %59, %54 : vector<8x257xi1>, vector<8x257xf32>
    %cst_33 = arith.constant 14.2857141 : f32
    %61 = vector.broadcast %cst_33 : f32 to vector<8x257xf32>
    %62 = arith.mulf %60, %61 : vector<8x257xf32>
    %c0_34 = arith.constant 0 : index
    %c0_35 = arith.constant 0 : index
    %63 = vector.load %arg10[%c0_34, %c0_35] : memref<8x257xf32, #tpu.memory_space<vmem>>, vector<8x257xf32>
    tpu.vector_store %arg10[%c0_34, %c0_35], %62 {strides = array<i32>} : memref<8x257xf32, #tpu.memory_space<vmem>>, vector<8x257xf32>,
    %c0_36 = arith.constant 0 : index
    %64 = memref.load %arg0[%c0_36] : memref<1xi32, #tpu.memory_space<smem>>
    %65 = tpu.iota {dimensions = array<i32: 0>} : vector<8x256xi32>
    %66 = tpu.iota {dimensions = array<i32: 1>} : vector<8x256xi32>
    %67 = vector.broadcast %64 : i32 to vector<8x256xi32>
    %68 = arith.addi %65, %67 : vector<8x256xi32>
    %69 = arith.cmpi eq, %66, %68 : vector<8x256xi32>
    %70 = arith.extui %69 : vector<8x256xi1> to vector<8x256xi32>
    %71 = arith.sitofp %70 : vector<8x256xi32> to vector<8x256xf32>
    %cst_37 = arith.constant dense<0.000000e+00> : vector<128x256xf32>
    %72 = tpu.matmul %41, %71, %cst_37 {dimension_numbers = #tpu.dot_dimension_numbers<[0], [0], [1], [1], [0, 1, 1, 1], [], []>} : vector<8x128xf32>, vector<8x256xf32>, vector<128x256xf32> -> vector<128x256xf32>
    %73 = tpu.iota {dimensions = array<i32: 1>} : vector<128x256xi32>
    %74 = vector.broadcast %64 : i32 to vector<128x256xi32>
    %75 = arith.cmpi sge, %73, %74 : vector<128x256xi32>
    %c8_i32 = arith.constant 8 : i32
    %76 = arith.addi %64, %c8_i32 : i32
    %77 = vector.broadcast %76 : i32 to vector<128x256xi32>
    %78 = arith.cmpi slt, %73, %77 : vector<128x256xi32>
    %79 = arith.andi %75, %78 : vector<128x256xi1>
    %c0_38 = arith.constant 0 : index
    %c0_39 = arith.constant 0 : index
    %80 = vector.load %arg7[%c0_38, %c0_39] : memref<128x256xf32, #tpu.memory_space<vmem>>, vector<128x256xf32>
    %81 = arith.select %79, %72, %80 : vector<128x256xi1>, vector<128x256xf32>
    %c0_40 = arith.constant 0 : index
    %c0_41 = arith.constant 0 : index
    %82 = vector.load %arg11[%c0_40, %c0_41] : memref<128x256xf32, #tpu.memory_space<vmem>>, vector<128x256xf32>
    tpu.vector_store %arg11[%c0_40, %c0_41], %81 {strides = array<i32>} : memref<128x256xf32, #tpu.memory_space<vmem>>, vector<128x256xf32>,
    return
  }
}

</mosaic_0001>

<llo_original>
// kernel: moco_forward.1
$region0: #{moco_forward.1}
  #allocation0 [shape = 'u32[]', space=smem, size = 0x4, offset = 0x4, fixed_abs, tag = 'smem constant byte address 0x4 - core index']
  #allocation1 [shape = 'u32[72,128]{1,0:T(1,128)}', space=vmem, size = 0x9000, scoped, tag = 'internal scratch']
  #allocation2 [shape = 's32[1]{0:T(128)S(6)}', space=smem, size = 0x200, scoped, tag = 'scoped memory for moco_forward.1']
  %s0 = inlined_call_operand.<no memory space> [shape: s32[1], index: 0, kind: input, shape index: {}]
  %s1 = inlined_call_operand.vmem [shape: f32[8,256], index: 1, kind: input, shape index: {}]
  %s2 = inlined_call_operand.vmem [shape: f32[8,256], index: 2, kind: input, shape index: {}]
  %s3 = inlined_call_operand.vmem [shape: f32[256,128], index: 3, kind: input, shape index: {}]
  %s4 = inlined_call_operand.vmem [shape: f32[1,128], index: 4, kind: input, shape index: {}]
  %s5 = inlined_call_operand.hbm [shape: f32[256,128], index: 5, kind: input, shape index: {}]
  %s6 = inlined_call_operand.vmem [shape: f32[1,128], index: 6, kind: input, shape index: {}]
  %s7 = inlined_call_operand.vmem [shape: f32[128,256], index: 7, kind: input, shape index: {}, may-alias: {7,11}]
  %s8 = inlined_call_operand.hbm [shape: f32[256,128], index: 8, kind: output, shape index: {0}]
  %s9 = inlined_call_operand.hbm [shape: f32[1,128], index: 9, kind: output, shape index: {1}]
  %s10 = inlined_call_operand.hbm [shape: f32[8,257], index: 10, kind: output, shape index: {2}]
  %s11 = inlined_call_operand.vmem [shape: f32[128,256], index: 11, kind: output, shape index: {3}, may-alias: {7,11}]
  %12 = xla_tuple %s8, %s9, %s10, %s11
  %s13 = sld [smem:[#allocation0]]
  $region70: #{moco_forward.1} parent=0
    _
  %s15 = ssub.s32 1, %s13
  %s16 = scalar_select 0, %s15, %s13
  %17 = sst [smem:[#allocation2]] %s0
  $region1: #{moco_forward.1} parent=0
    #allocation3 [shape = 'u8[131072]{0}', space=vmem, size = 0x20000, scoped, tag = 'input window, operand 5, single buffered']
    #allocation4 [shape = 's32[1]{0}', space=sflag, size = 0x4, scoped, tag = 'scoped memory for moco_forward.1']
    #allocation5 [shape = 's32[1]{0}', space=sflag, size = 0x4, scoped, tag = 'scoped memory for moco_forward.1']
    #allocation6 [shape = 'u8[131072]{0}', space=vmem, size = 0x20000, scoped, tag = 'output window, operand 0, single buffered']
    #allocation7 [shape = 'u8[512]{0}', space=vmem, size = 0x400, scoped, tag = 'output window, operand 1, single buffered']
    #allocation8 [shape = 's32[1]{0}', space=sflag, size = 0x4, scoped, tag = 'scoped memory for moco_forward.1']
    #allocation9 [shape = 'u8[12288]{0}', space=vmem, size = 0x3000, scoped, tag = 'output window, operand 2, single buffered']
    %18 = vsyncpa [#allocation4], 0
    %19 = vsyncpa [#allocation5], 0
    %20 = vsyncpa [#allocation8], 0
    // Predicated region
    $region2: #{moco_forward.1} parent=1 // pred_check
      _
    $region3: #{moco_forward.1} parent=1 // pred_check_branch
      %22 = sbr.rel (0) target = $region5
    $region4: #{moco_forward.1} parent=1 // pred_region
      _
    $region5: #{moco_forward.1} parent=1 // pred_fallthru
      _
    // Predicated region
    $region6: #{moco_forward.1} parent=1 // pred_check
      _
    $region7: #{moco_forward.1} parent=1 // pred_check_branch
      %24 = sbr.rel (0) target = $region9
    $region8: #{moco_forward.1} parent=1 // pred_region
      _
    $region9: #{moco_forward.1} parent=1 // pred_fallthru
      _
    // Predicated region
    $region10: #{moco_forward.1} parent=1 // pred_check
      _
    $region11: #{moco_forward.1} parent=1 // pred_check_branch
      %26 = sbr.rel (0) target = $region13
    $region12: #{moco_forward.1} parent=1 // pred_region
      _
    $region13: #{moco_forward.1} parent=1 // pred_fallthru
      _
    // Predicated region
    $region14: #{moco_forward.1} parent=1 // pred_check
      _
    $region15: #{moco_forward.1} parent=1 // pred_check_branch
      %28 = sbr.rel (0) target = $region17
    $region16: #{moco_forward.1} parent=1 // pred_region
      _
    $region17: #{moco_forward.1} parent=1 // pred_fallthru
      _
    // Predicated region
    $region18: #{moco_forward.1} parent=1 // pred_check
      _
    $region19: #{moco_forward.1} parent=1 // pred_check_branch
      %30 = sbr.rel (0) target = $region21
    $region20: #{moco_forward.1} parent=1 // pred_region
      _
    $region21: #{moco_forward.1} parent=1 // pred_fallthru
      _
    // Predicated region
    $region22: #{moco_forward.1} parent=1 // pred_check
      _
    $region23: #{moco_forward.1} parent=1 // pred_check_branch
      %32 = sbr.rel (0) target = $region25
    $region24: #{moco_forward.1} parent=1 // pred_region
      %34 = vsyncadd [#allocation4], 0
      %s35 = sshll.u32 %s5, 4
      %s36 = int_to_ptr.hbm [resolvable:$true] %s35
      %s37 = sshll.u32 [#allocation3], 4
      %s38 = int_to_ptr.vmem [resolvable:$true] %s37
      %43 = dma.hbm_to_vmem [thread:$0]  %s36, 4096, %s38, [#allocation4], 128, 128, 8
    $region25: #{moco_forward.1} parent=1 // pred_fallthru
      _
    // Predicated region
    $region26: #{moco_forward.1} parent=1 // pred_check
      _
    $region27: #{moco_forward.1} parent=1 // pred_check_branch
      %45 = sbr.rel (0) target = $region29
    $region28: #{moco_forward.1} parent=1 // pred_region
      _
    $region29: #{moco_forward.1} parent=1 // pred_fallthru
      _
    // Predicated region
    $region30: #{moco_forward.1} parent=1 // pred_check
      _
    $region31: #{moco_forward.1} parent=1 // pred_check_branch
      %47 = sbr.rel (0) target = $region33
    $region32: #{moco_forward.1} parent=1 // pred_region
      _
    $region33: #{moco_forward.1} parent=1 // pred_fallthru
      _
    // Predicated region
    $region34: #{moco_forward.1} parent=1 // pred_check
      _
    $region35: #{moco_forward.1} parent=1 // pred_check_branch
      %49 = sbr.rel (0) target = $region37
    $region36: #{moco_forward.1} parent=1 // pred_region
      %51 = dma.done [#allocation4], 4096
    $region37: #{moco_forward.1} parent=1 // pred_fallthru
      _
    %v52 = vld [vmem:[#allocation3] sm:$0xff]
    %v53 = vld [vmem:[#allocation3 + $0x8] sm:$0xff]
    %v54 = vld [vmem:[#allocation3 + $0x10] sm:$0xff]
    %v55 = vld [vmem:[#allocation3 + $0x18] sm:$0xff]
    %v56 = vld [vmem:[#allocation3 + $0x20] sm:$0xff]
    %v57 = vld [vmem:[#allocation3 + $0x28] sm:$0xff]
    %v58 = vld [vmem:[#allocation3 + $0x30] sm:$0xff]
    %v59 = vld [vmem:[#allocation3 + $0x38] sm:$0xff]
    %v60 = vld [vmem:[#allocation3 + $0x40] sm:$0xff]
    %v61 = vld [vmem:[#allocation3 + $0x48] sm:$0xff]
    %v62 = vld [vmem:[#allocation3 + $0x50] sm:$0xff]
    %v63 = vld [vmem:[#allocation3 + $0x58] sm:$0xff]
    %v64 = vld [vmem:[#allocation3 + $0x60] sm:$0xff]
    %v65 = vld [vmem:[#allocation3 + $0x68] sm:$0xff]
    %v66 = vld [vmem:[#allocation3 + $0x70] sm:$0xff]
    %v67 = vld [vmem:[#allocation3 + $0x78] sm:$0xff]
    %v68 = vld [vmem:[#allocation3 + $0x80] sm:$0xff]
    %v69 = vld [vmem:[#allocation3 + $0x88] sm:$0xff]
    %v70 = vld [vmem:[#allocation3 + $0x90] sm:$0xff]
    %v71 = vld [vmem:[#allocation3 + $0x98] sm:$0xff]
    %v72 = vld [vmem:[#allocation3 + $0xa0] sm:$0xff]
    %v73 = vld [vmem:[#allocation3 + $0xa8] sm:$0xff]
    %v74 = vld [vmem:[#allocation3 + $0xb0] sm:$0xff]
    %v75 = vld [vmem:[#allocation3 + $0xb8] sm:$0xff]
    %v76 = vld [vmem:[#allocation3 + $0xc0] sm:$0xff]
    %v77 = vld [vmem:[#allocation3 + $0xc8] sm:$0xff]
    %v78 = vld [vmem:[#allocation3 + $0xd0] sm:$0xff]
    %v79 = vld [vmem:[#allocation3 + $0xd8] sm:$0xff]
    %v80 = vld [vmem:[#allocation3 + $0xe0] sm:$0xff]
    %v81 = vld [vmem:[#allocation3 + $0xe8] sm:$0xff]
    %v82 = vld [vmem:[#allocation3 + $0xf0] sm:$0xff]
    %v83 = vld [vmem:[#allocation3 + $0xf8] sm:$0xff]
    %v84 = vmul.f32 %v52, 0.999
    %v85 = vmul.f32 %v53, 0.999
    %v86 = vmul.f32 %v54, 0.999
    %v87 = vmul.f32 %v55, 0.999
    %v88 = vmul.f32 %v56, 0.999
    %v89 = vmul.f32 %v57, 0.999
    %v90 = vmul.f32 %v58, 0.999
    %v91 = vmul.f32 %v59, 0.999
    %v92 = vmul.f32 %v60, 0.999
    %v93 = vmul.f32 %v61, 0.999
    %v94 = vmul.f32 %v62, 0.999
    %v95 = vmul.f32 %v63, 0.999
    %v96 = vmul.f32 %v64, 0.999
    %v97 = vmul.f32 %v65, 0.999
    %v98 = vmul.f32 %v66, 0.999
    %v99 = vmul.f32 %v67, 0.999
    %v100 = vmul.f32 %v68, 0.999
    %v101 = vmul.f32 %v69, 0.999
    %v102 = vmul.f32 %v70, 0.999
    %v103 = vmul.f32 %v71, 0.999
    %v104 = vmul.f32 %v72, 0.999
    %v105 = vmul.f32 %v73, 0.999
    %v106 = vmul.f32 %v74, 0.999
    %v107 = vmul.f32 %v75, 0.999
    %v108 = vmul.f32 %v76, 0.999
    %v109 = vmul.f32 %v77, 0.999
    %v110 = vmul.f32 %v78, 0.999
    %v111 = vmul.f32 %v79, 0.999
    %v112 = vmul.f32 %v80, 0.999
    %v113 = vmul.f32 %v81, 0.999
    %v114 = vmul.f32 %v82, 0.999
    %v115 = vmul.f32 %v83, 0.999
    %v116 = vld [vmem:[%s3] sm:$0xff]
    %v117 = vld [vmem:[%s3 + $0x8] sm:$0xff]
    %v118 = vld [vmem:[%s3 + $0x10] sm:$0xff]
    %v119 = vld [vmem:[%s3 + $0x18] sm:$0xff]
    %v120 = vld [vmem:[%s3 + $0x20] sm:$0xff]
    %v121 = vld [vmem:[%s3 + $0x28] sm:$0xff]
    %v122 = vld [vmem:[%s3 + $0x30] sm:$0xff]
    %v123 = vld [vmem:[%s3 + $0x38] sm:$0xff]
    %v124 = vld [vmem:[%s3 + $0x40] sm:$0xff]
    %v125 = vld [vmem:[%s3 + $0x48] sm:$0xff]
    %v126 = vld [vmem:[%s3 + $0x50] sm:$0xff]
    %v127 = vld [vmem:[%s3 + $0x58] sm:$0xff]
    %v128 = vld [vmem:[%s3 + $0x60] sm:$0xff]
    %v129 = vld [vmem:[%s3 + $0x68] sm:$0xff]
    %v130 = vld [vmem:[%s3 + $0x70] sm:$0xff]
    %v131 = vld [vmem:[%s3 + $0x78] sm:$0xff]
    %v132 = vld [vmem:[%s3 + $0x80] sm:$0xff]
    %v133 = vld [vmem:[%s3 + $0x88] sm:$0xff]
    %v134 = vld [vmem:[%s3 + $0x90] sm:$0xff]
    %v135 = vld [vmem:[%s3 + $0x98] sm:$0xff]
    %v136 = vld [vmem:[%s3 + $0xa0] sm:$0xff]
    %v137 = vld [vmem:[%s3 + $0xa8] sm:$0xff]
    %v138 = vld [vmem:[%s3 + $0xb0] sm:$0xff]
    %v139 = vld [vmem:[%s3 + $0xb8] sm:$0xff]
    %v140 = vld [vmem:[%s3 + $0xc0] sm:$0xff]
    %v141 = vld [vmem:[%s3 + $0xc8] sm:$0xff]
    %v142 = vld [vmem:[%s3 + $0xd0] sm:$0xff]
    %v143 = vld [vmem:[%s3 + $0xd8] sm:$0xff]
    %v144 = vld [vmem:[%s3 + $0xe0] sm:$0xff]
    %v145 = vld [vmem:[%s3 + $0xe8] sm:$0xff]
    %v146 = vld [vmem:[%s3 + $0xf0] sm:$0xff]
    %v147 = vld [vmem:[%s3 + $0xf8] sm:$0xff]
    %v148 = vmul.f32 %v116, 0.001
    %v149 = vmul.f32 %v117, 0.001
    %v150 = vmul.f32 %v118, 0.001
    %v151 = vmul.f32 %v119, 0.001
    %v152 = vmul.f32 %v120, 0.001
    %v153 = vmul.f32 %v121, 0.001
    %v154 = vmul.f32 %v122, 0.001
    %v155 = vmul.f32 %v123, 0.001
    %v156 = vmul.f32 %v124, 0.001
    %v157 = vmul.f32 %v125, 0.001
    %v158 = vmul.f32 %v126, 0.001
    %v159 = vmul.f32 %v127, 0.001
    %v160 = vmul.f32 %v128, 0.001
    %v161 = vmul.f32 %v129, 0.001
    %v162 = vmul.f32 %v130, 0.001
    %v163 = vmul.f32 %v131, 0.001
    %v164 = vmul.f32 %v132, 0.001
    %v165 = vmul.f32 %v133, 0.001
    %v166 = vmul.f32 %v134, 0.001
    %v167 = vmul.f32 %v135, 0.001
    %v168 = vmul.f32 %v136, 0.001
    %v169 = vmul.f32 %v137, 0.001
    %v170 = vmul.f32 %v138, 0.001
    %v171 = vmul.f32 %v139, 0.001
    %v172 = vmul.f32 %v140, 0.001
    %v173 = vmul.f32 %v141, 0.001
    %v174 = vmul.f32 %v142, 0.001
    %v175 = vmul.f32 %v143, 0.001
    %v176 = vmul.f32 %v144, 0.001
    %v177 = vmul.f32 %v145, 0.001
    %v178 = vmul.f32 %v146, 0.001
    %v179 = vmul.f32 %v147, 0.001
    %v180 = vadd.f32 %v84, %v148
    %v181 = vadd.f32 %v85, %v149
    %v182 = vadd.f32 %v86, %v150
    %v183 = vadd.f32 %v87, %v151
    %v184 = vadd.f32 %v88, %v152
    %v185 = vadd.f32 %v89, %v153
    %v186 = vadd.f32 %v90, %v154
    %v187 = vadd.f32 %v91, %v155
    %v188 = vadd.f32 %v92, %v156
    %v189 = vadd.f32 %v93, %v157
    %v190 = vadd.f32 %v94, %v158
    %v191 = vadd.f32 %v95, %v159
    %v192 = vadd.f32 %v96, %v160
    %v193 = vadd.f32 %v97, %v161
    %v194 = vadd.f32 %v98, %v162
    %v195 = vadd.f32 %v99, %v163
    %v196 = vadd.f32 %v100, %v164
    %v197 = vadd.f32 %v101, %v165
    %v198 = vadd.f32 %v102, %v166
    %v199 = vadd.f32 %v103, %v167
    %v200 = vadd.f32 %v104, %v168
    %v201 = vadd.f32 %v105, %v169
    %v202 = vadd.f32 %v106, %v170
    %v203 = vadd.f32 %v107, %v171
    %v204 = vadd.f32 %v108, %v172
    %v205 = vadd.f32 %v109, %v173
    %v206 = vadd.f32 %v110, %v174
    %v207 = vadd.f32 %v111, %v175
    %v208 = vadd.f32 %v112, %v176
    %v209 = vadd.f32 %v113, %v177
    %v210 = vadd.f32 %v114, %v178
    %v211 = vadd.f32 %v115, %v179
    %v212 = vld [vmem:[%s6] sm:$0x1]
    %v213 = vmul.f32 %v212, 0.999
    %v214 = vld [vmem:[%s4] sm:$0x1]
    %v215 = vmul.f32 %v214, 0.001
    %v216 = vadd.f32 %v213, %v215
    %217 = vst [vmem:[#allocation6] sm:$0xff] %v180
    %218 = vst [vmem:[#allocation6 + $0x8] sm:$0xff] %v181
    %219 = vst [vmem:[#allocation6 + $0x10] sm:$0xff] %v182
    %220 = vst [vmem:[#allocation6 + $0x18] sm:$0xff] %v183
    %221 = vst [vmem:[#allocation6 + $0x20] sm:$0xff] %v184
    %222 = vst [vmem:[#allocation6 + $0x28] sm:$0xff] %v185
    %223 = vst [vmem:[#allocation6 + $0x30] sm:$0xff] %v186
    %224 = vst [vmem:[#allocation6 + $0x38] sm:$0xff] %v187
    %225 = vst [vmem:[#allocation6 + $0x40] sm:$0xff] %v188
    %226 = vst [vmem:[#allocation6 + $0x48] sm:$0xff] %v189
    %227 = vst [vmem:[#allocation6 + $0x50] sm:$0xff] %v190
    %228 = vst [vmem:[#allocation6 + $0x58] sm:$0xff] %v191
    %229 = vst [vmem:[#allocation6 + $0x60] sm:$0xff] %v192
    %230 = vst [vmem:[#allocation6 + $0x68] sm:$0xff] %v193
    %231 = vst [vmem:[#allocation6 + $0x70] sm:$0xff] %v194
    %232 = vst [vmem:[#allocation6 + $0x78] sm:$0xff] %v195
    %233 = vst [vmem:[#allocation6 + $0x80] sm:$0xff] %v196
    %234 = vst [vmem:[#allocation6 + $0x88] sm:$0xff] %v197
    %235 = vst [vmem:[#allocation6 + $0x90] sm:$0xff] %v198
    %236 = vst [vmem:[#allocation6 + $0x98] sm:$0xff] %v199
    %237 = vst [vmem:[#allocation6 + $0xa0] sm:$0xff] %v200
    %238 = vst [vmem:[#allocation6 + $0xa8] sm:$0xff] %v201
    %239 = vst [vmem:[#allocation6 + $0xb0] sm:$0xff] %v202
    %240 = vst [vmem:[#allocation6 + $0xb8] sm:$0xff] %v203
    %241 = vst [vmem:[#allocation6 + $0xc0] sm:$0xff] %v204
    %242 = vst [vmem:[#allocation6 + $0xc8] sm:$0xff] %v205
    %243 = vst [vmem:[#allocation6 + $0xd0] sm:$0xff] %v206
    %244 = vst [vmem:[#allocation6 + $0xd8] sm:$0xff] %v207
    %245 = vst [vmem:[#allocation6 + $0xe0] sm:$0xff] %v208
    %246 = vst [vmem:[#allocation6 + $0xe8] sm:$0xff] %v209
    %247 = vst [vmem:[#allocation6 + $0xf0] sm:$0xff] %v210
    %248 = vst [vmem:[#allocation6 + $0xf8] sm:$0xff] %v211
    %249 = vst [vmem:[#allocation7] sm:$0x1] %v216
    %v250 = vld [vmem:[%s1] sm:$0xff]
    %v251 = vld [vmem:[%s1 + $0x8] sm:$0xff]
    %v252 = vld [vmem:[%s3] sm:$0xff]
    %v253 = vld [vmem:[%s3 + $0x8] sm:$0xff]
    %v254 = vld [vmem:[%s3 + $0x10] sm:$0xff]
    %v255 = vld [vmem:[%s3 + $0x18] sm:$0xff]
    %v256 = vld [vmem:[%s3 + $0x20] sm:$0xff]
    %v257 = vld [vmem:[%s3 + $0x28] sm:$0xff]
    %v258 = vld [vmem:[%s3 + $0x30] sm:$0xff]
    %v259 = vld [vmem:[%s3 + $0x38] sm:$0xff]
    %v260 = vld [vmem:[%s3 + $0x40] sm:$0xff]
    %v261 = vld [vmem:[%s3 + $0x48] sm:$0xff]
    %v262 = vld [vmem:[%s3 + $0x50] sm:$0xff]
    %v263 = vld [vmem:[%s3 + $0x58] sm:$0xff]
    %v264 = vld [vmem:[%s3 + $0x60] sm:$0xff]
    %v265 = vld [vmem:[%s3 + $0x68] sm:$0xff]
    %v266 = vld [vmem:[%s3 + $0x70] sm:$0xff]
    %v267 = vld [vmem:[%s3 + $0x78] sm:$0xff]
    %v268 = vld [vmem:[%s3 + $0x80] sm:$0xff]
    %v269 = vld [vmem:[%s3 + $0x88] sm:$0xff]
    %v270 = vld [vmem:[%s3 + $0x90] sm:$0xff]
    %v271 = vld [vmem:[%s3 + $0x98] sm:$0xff]
    %v272 = vld [vmem:[%s3 + $0xa0] sm:$0xff]
    %v273 = vld [vmem:[%s3 + $0xa8] sm:$0xff]
    %v274 = vld [vmem:[%s3 + $0xb0] sm:$0xff]
    %v275 = vld [vmem:[%s3 + $0xb8] sm:$0xff]
    %v276 = vld [vmem:[%s3 + $0xc0] sm:$0xff]
    %v277 = vld [vmem:[%s3 + $0xc8] sm:$0xff]
    %v278 = vld [vmem:[%s3 + $0xd0] sm:$0xff]
    %v279 = vld [vmem:[%s3 + $0xd8] sm:$0xff]
    %v280 = vld [vmem:[%s3 + $0xe0] sm:$0xff]
    %v281 = vld [vmem:[%s3 + $0xe8] sm:$0xff]
    %v282 = vld [vmem:[%s3 + $0xf0] sm:$0xff]
    %v283 = vld [vmem:[%s3 + $0xf8] sm:$0xff]
    %v284 = vld [vmem:[%s4] sm:$0x1]
    %v286 = vperm.slane %v284, 0
    %288 = vmatpush.msra.mxu0 %v267
    %289 = vmatpush.msra.mxu0 %v266
    %290 = vmatpush.msra.mxu0 %v265
    %291 = vmatpush.msra.mxu0 %v264
    %292 = vmatpush.msra.mxu0 %v263
    %293 = vmatpush.msra.mxu0 %v262
    %294 = vmatpush.msra.mxu0 %v261
    %295 = vmatpush.msra.mxu0 %v260
    %296 = vmatpush.msra.mxu0 %v259
    %297 = vmatpush.msra.mxu0 %v258
    %298 = vmatpush.msra.mxu0 %v257
    %299 = vmatpush.msra.mxu0 %v256
    %300 = vmatpush.msra.mxu0 %v255
    %301 = vmatpush.msra.mxu0 %v254
    %302 = vmatpush.msra.mxu0 %v253
    %303 = vmatpush.msra.mxu0 %v252
    %304 = vmatmul.f32.gmra.mxu0 %v250
    %v305 = vpop.f32.mrf.mxu0
    %v306 = vadd.f32 %v286, %v305
    %307 = vdwg.mxu0
    %308 = vmatpush.msra.mxu0 %v283
    %309 = vmatpush.msra.mxu0 %v282
    %310 = vmatpush.msra.mxu0 %v281
    %311 = vmatpush.msra.mxu0 %v280
    %312 = vmatpush.msra.mxu0 %v279
    %313 = vmatpush.msra.mxu0 %v278
    %314 = vmatpush.msra.mxu0 %v277
    %315 = vmatpush.msra.mxu0 %v276
    %316 = vmatpush.msra.mxu0 %v275
    %317 = vmatpush.msra.mxu0 %v274
    %318 = vmatpush.msra.mxu0 %v273
    %319 = vmatpush.msra.mxu0 %v272
    %320 = vmatpush.msra.mxu0 %v271
    %321 = vmatpush.msra.mxu0 %v270
    %322 = vmatpush.msra.mxu0 %v269
    %323 = vmatpush.msra.mxu0 %v268
    %324 = vmatmul.f32.gmra.mxu0 %v251
    %v325 = vpop.f32.mrf.mxu0
    %v326 = vadd.f32 %v306, %v325
    %327 = vdwg.mxu0
    %v328 = vmul.f32 %v326, %v326
    %329 = vadd.xlane.f32.xlu0 %v328
    %v330 = vpop.xlane.xlu0 %329
    %v331 = vmax.f32 %v330, 1e-24
    %v332 = vrsqrt.pop %v331
    %v333 = vmul.f32 %v332, %v331
    %v334 = vmul.f32 %v333, %v332
    %v335 = vmul.f32 0.5, %v334
    %v336 = vsub.f32 1.5, %v335
    %v337 = vmul.f32 %v332, %v336
    %vm338 = vweird.f32 %v331
    %vm339 = vweird.f32 %v332
    %vm340 = vmor %vm338, %vm339
    %v341 = vsel %vm340, %v332, %v337
    %v342 = vmul.f32 %v326, %v341
    %v343 = vld [vmem:[%s2] sm:$0xff]
    %v344 = vld [vmem:[%s2 + $0x8] sm:$0xff]
    %v346 = vperm.slane %v216, 0
    %348 = vmatpush.msra.mxu0 %v195
    %349 = vmatpush.msra.mxu0 %v194
    %350 = vmatpush.msra.mxu0 %v193
    %351 = vmatpush.msra.mxu0 %v192
    %352 = vmatpush.msra.mxu0 %v191
    %353 = vmatpush.msra.mxu0 %v190
    %354 = vmatpush.msra.mxu0 %v189
    %355 = vmatpush.msra.mxu0 %v188
    %356 = vmatpush.msra.mxu0 %v187
    %357 = vmatpush.msra.mxu0 %v186
    %358 = vmatpush.msra.mxu0 %v185
    %359 = vmatpush.msra.mxu0 %v184
    %360 = vmatpush.msra.mxu0 %v183
    %361 = vmatpush.msra.mxu0 %v182
    %362 = vmatpush.msra.mxu0 %v181
    %363 = vmatpush.msra.mxu0 %v180
    %364 = vmatmul.f32.gmra.mxu0 %v343
    %v365 = vpop.f32.mrf.mxu0
    %v366 = vadd.f32 %v346, %v365
    %367 = vdwg.mxu0
    %368 = vmatpush.msra.mxu0 %v211
    %369 = vmatpush.msra.mxu0 %v210
    %370 = vmatpush.msra.mxu0 %v209
    %371 = vmatpush.msra.mxu0 %v208
    %372 = vmatpush.msra.mxu0 %v207
    %373 = vmatpush.msra.mxu0 %v206
    %374 = vmatpush.msra.mxu0 %v205
    %375 = vmatpush.msra.mxu0 %v204
    %376 = vmatpush.msra.mxu0 %v203
    %377 = vmatpush.msra.mxu0 %v202
    %378 = vmatpush.msra.mxu0 %v201
    %379 = vmatpush.msra.mxu0 %v200
    %380 = vmatpush.msra.mxu0 %v199
    %381 = vmatpush.msra.mxu0 %v198
    %382 = vmatpush.msra.mxu0 %v197
    %383 = vmatpush.msra.mxu0 %v196
    %384 = vmatmul.f32.gmra.mxu0 %v344
    %v385 = vpop.f32.mrf.mxu0
    %v386 = vadd.f32 %v366, %v385
    %387 = vdwg.mxu0
    %v388 = vmul.f32 %v386, %v386
    %389 = vadd.xlane.f32.xlu0 %v388
    %v390 = vpop.xlane.xlu0 %389
    %v391 = vmax.f32 %v390, 1e-24
    %v392 = vrsqrt.pop %v391
    %v393 = vmul.f32 %v392, %v391
    %v394 = vmul.f32 %v393, %v392
    %v395 = vmul.f32 0.5, %v394
    %v396 = vsub.f32 1.5, %v395
    %v397 = vmul.f32 %v392, %v396
    %vm398 = vweird.f32 %v391
    %vm399 = vweird.f32 %v392
    %vm400 = vmor %vm398, %vm399
    %v401 = vsel %vm400, %v392, %v397
    %v402 = vmul.f32 %v386, %v401
    %v403 = vmul.f32 %v342, %v402
    %404 = vadd.xlane.f32.xlu0 %v403
    %v405 = vpop.xlane.xlu0 %404
    %v406 = vld [vmem:[%s7] sm:$0xff]
    %v407 = vld [vmem:[%s7 + $0x8] sm:$0xff]
    %v408 = vld [vmem:[%s7 + $0x10] sm:$0xff]
    %v409 = vld [vmem:[%s7 + $0x18] sm:$0xff]
    %v410 = vld [vmem:[%s7 + $0x20] sm:$0xff]
    %v411 = vld [vmem:[%s7 + $0x28] sm:$0xff]
    %v412 = vld [vmem:[%s7 + $0x30] sm:$0xff]
    %v413 = vld [vmem:[%s7 + $0x38] sm:$0xff]
    %v414 = vld [vmem:[%s7 + $0x40] sm:$0xff]
    %v415 = vld [vmem:[%s7 + $0x48] sm:$0xff]
    %v416 = vld [vmem:[%s7 + $0x50] sm:$0xff]
    %v417 = vld [vmem:[%s7 + $0x58] sm:$0xff]
    %v418 = vld [vmem:[%s7 + $0x60] sm:$0xff]
    %v419 = vld [vmem:[%s7 + $0x68] sm:$0xff]
    %v420 = vld [vmem:[%s7 + $0x70] sm:$0xff]
    %v421 = vld [vmem:[%s7 + $0x78] sm:$0xff]
    %v422 = vld [vmem:[%s7 + $0x80] sm:$0xff]
    %v423 = vld [vmem:[%s7 + $0x88] sm:$0xff]
    %v424 = vld [vmem:[%s7 + $0x90] sm:$0xff]
    %v425 = vld [vmem:[%s7 + $0x98] sm:$0xff]
    %v426 = vld [vmem:[%s7 + $0xa0] sm:$0xff]
    %v427 = vld [vmem:[%s7 + $0xa8] sm:$0xff]
    %v428 = vld [vmem:[%s7 + $0xb0] sm:$0xff]
    %v429 = vld [vmem:[%s7 + $0xb8] sm:$0xff]
    %v430 = vld [vmem:[%s7 + $0xc0] sm:$0xff]
    %v431 = vld [vmem:[%s7 + $0xc8] sm:$0xff]
    %v432 = vld [vmem:[%s7 + $0xd0] sm:$0xff]
    %v433 = vld [vmem:[%s7 + $0xd8] sm:$0xff]
    %v434 = vld [vmem:[%s7 + $0xe0] sm:$0xff]
    %v435 = vld [vmem:[%s7 + $0xe8] sm:$0xff]
    %v436 = vld [vmem:[%s7 + $0xf0] sm:$0xff]
    %v437 = vld [vmem:[%s7 + $0xf8] sm:$0xff]
    %438 = vmatpush.msra.mxu0 %v436
    %439 = vmatpush.msra.mxu0 %v434
    %440 = vmatpush.msra.mxu0 %v432
    %441 = vmatpush.msra.mxu0 %v430
    %442 = vmatpush.msra.mxu0 %v428
    %443 = vmatpush.msra.mxu0 %v426
    %444 = vmatpush.msra.mxu0 %v424
    %445 = vmatpush.msra.mxu0 %v422
    %446 = vmatpush.msra.mxu0 %v420
    %447 = vmatpush.msra.mxu0 %v418
    %448 = vmatpush.msra.mxu0 %v416
    %449 = vmatpush.msra.mxu0 %v414
    %450 = vmatpush.msra.mxu0 %v412
    %451 = vmatpush.msra.mxu0 %v410
    %452 = vmatpush.msra.mxu0 %v408
    %453 = vmatpush.msra.mxu0 %v406
    %454 = vmatmul.f32.gmra.mxu0 %v342
    %v455 = vpop.f32.mrf.mxu0
    %v456 = vadd.f32 0.0, %v455
    %457 = vdwg.mxu0
    %458 = vmatpush.msra.mxu0 %v437
    %459 = vmatpush.msra.mxu0 %v435
    %460 = vmatpush.msra.mxu0 %v433
    %461 = vmatpush.msra.mxu0 %v431
    %462 = vmatpush.msra.mxu0 %v429
    %463 = vmatpush.msra.mxu0 %v427
    %464 = vmatpush.msra.mxu0 %v425
    %465 = vmatpush.msra.mxu0 %v423
    %466 = vmatpush.msra.mxu0 %v421
    %467 = vmatpush.msra.mxu0 %v419
    %468 = vmatpush.msra.mxu0 %v417
    %469 = vmatpush.msra.mxu0 %v415
    %470 = vmatpush.msra.mxu0 %v413
    %471 = vmatpush.msra.mxu0 %v411
    %472 = vmatpush.msra.mxu0 %v409
    %473 = vmatpush.msra.mxu0 %v407
    %474 = vmatmul.f32.gmra.mxu0 %v342
    %v475 = vpop.f32.mrf.mxu0
    %v476 = vadd.f32 0.0, %v475
    %477 = vdwg.mxu0
    %v478 = vlaneseq
    %v479 = vshrl.u32 %v478, 7
    %v480 = vadd.s32 %v479, 8
    %v481 = vadd.s32 %v479, 16
    %v482 = vadd.s32 %v479, 24
    %v483 = vadd.s32 %v479, 32
    %v484 = vadd.s32 %v479, 40
    %v485 = vadd.s32 %v479, 48
    %v486 = vadd.s32 %v479, 56
    %v487 = vadd.s32 %v479, 64
    %v488 = vadd.s32 %v479, 72
    %v489 = vadd.s32 %v479, 80
    %v490 = vadd.s32 %v479, 88
    %v491 = vadd.s32 %v479, 96
    %v492 = vadd.s32 %v479, 104
    %v493 = vadd.s32 %v479, 112
    %v494 = vadd.s32 %v479, 120
    %v495 = vadd.s32 %v479, 128
    %v496 = vadd.s32 %v479, 136
    %v497 = vadd.s32 %v479, 144
    %v498 = vadd.s32 %v479, 152
    %v499 = vadd.s32 %v479, 160
    %v500 = vadd.s32 %v479, 168
    %v501 = vadd.s32 %v479, 176
    %v502 = vadd.s32 %v479, 184
    %v503 = vadd.s32 %v479, 192
    %v504 = vadd.s32 %v479, 200
    %v505 = vadd.s32 %v479, 208
    %v506 = vadd.s32 %v479, 216
    %v507 = vadd.s32 %v479, 224
    %v508 = vadd.s32 %v479, 232
    %v509 = vadd.s32 %v479, 240
    %v510 = vadd.s32 %v479, 248
    %v511 = vlaneseq
    %v512 = vand.u32 %v511, 127
    %v513 = vadd.s32 %v512, 128
    %v514 = vadd.s32 %v512, 256
    %v515 = vadd.s32 %v479, 1
    %v516 = vadd.s32 %v480, 1
    %v517 = vadd.s32 %v481, 1
    %v518 = vadd.s32 %v482, 1
    %v519 = vadd.s32 %v483, 1
    %v520 = vadd.s32 %v484, 1
    %v521 = vadd.s32 %v485, 1
    %v522 = vadd.s32 %v486, 1
    %v523 = vadd.s32 %v487, 1
    %v524 = vadd.s32 %v488, 1
    %v525 = vadd.s32 %v489, 1
    %v526 = vadd.s32 %v490, 1
    %v527 = vadd.s32 %v491, 1
    %v528 = vadd.s32 %v492, 1
    %v529 = vadd.s32 %v493, 1
    %v530 = vadd.s32 %v494, 1
    %v531 = vadd.s32 %v495, 1
    %v532 = vadd.s32 %v496, 1
    %v533 = vadd.s32 %v497, 1
    %v534 = vadd.s32 %v498, 1
    %v535 = vadd.s32 %v499, 1
    %v536 = vadd.s32 %v500, 1
    %v537 = vadd.s32 %v501, 1
    %v538 = vadd.s32 %v502, 1
    %v539 = vadd.s32 %v503, 1
    %v540 = vadd.s32 %v504, 1
    %v541 = vadd.s32 %v505, 1
    %v542 = vadd.s32 %v506, 1
    %v543 = vadd.s32 %v507, 1
    %v544 = vadd.s32 %v508, 1
    %v545 = vadd.s32 %v509, 1
    %v546 = vadd.s32 %v510, 1
    %vm547 = vcmp.eq.s32.totalorder %v512, %v515
    %vm548 = vcmp.eq.s32.totalorder %v513, %v515
    %vm549 = vcmp.eq.s32.totalorder %v514, %v515
    %vm550 = vcmp.eq.s32.totalorder %v512, %v516
    %vm551 = vcmp.eq.s32.totalorder %v513, %v516
    %vm552 = vcmp.eq.s32.totalorder %v514, %v516
    %vm553 = vcmp.eq.s32.totalorder %v512, %v517
    %vm554 = vcmp.eq.s32.totalorder %v513, %v517
    %vm555 = vcmp.eq.s32.totalorder %v514, %v517
    %vm556 = vcmp.eq.s32.totalorder %v512, %v518
    %vm557 = vcmp.eq.s32.totalorder %v513, %v518
    %vm558 = vcmp.eq.s32.totalorder %v514, %v518
    %vm559 = vcmp.eq.s32.totalorder %v512, %v519
    %vm560 = vcmp.eq.s32.totalorder %v513, %v519
    %vm561 = vcmp.eq.s32.totalorder %v514, %v519
    %vm562 = vcmp.eq.s32.totalorder %v512, %v520
    %vm563 = vcmp.eq.s32.totalorder %v513, %v520
    %vm564 = vcmp.eq.s32.totalorder %v514, %v520
    %vm565 = vcmp.eq.s32.totalorder %v512, %v521
    %vm566 = vcmp.eq.s32.totalorder %v513, %v521
    %vm567 = vcmp.eq.s32.totalorder %v514, %v521
    %vm568 = vcmp.eq.s32.totalorder %v512, %v522
    %vm569 = vcmp.eq.s32.totalorder %v513, %v522
    %vm570 = vcmp.eq.s32.totalorder %v514, %v522
    %vm571 = vcmp.eq.s32.totalorder %v512, %v523
    %vm572 = vcmp.eq.s32.totalorder %v513, %v523
    %vm573 = vcmp.eq.s32.totalorder %v514, %v523
    %vm574 = vcmp.eq.s32.totalorder %v512, %v524
    %vm575 = vcmp.eq.s32.totalorder %v513, %v524
    %vm576 = vcmp.eq.s32.totalorder %v514, %v524
    %vm577 = vcmp.eq.s32.totalorder %v512, %v525
    %vm578 = vcmp.eq.s32.totalorder %v513, %v525
    %vm579 = vcmp.eq.s32.totalorder %v514, %v525
    %vm580 = vcmp.eq.s32.totalorder %v512, %v526
    %vm581 = vcmp.eq.s32.totalorder %v513, %v526
    %vm582 = vcmp.eq.s32.totalorder %v514, %v526
    %vm583 = vcmp.eq.s32.totalorder %v512, %v527
    %vm584 = vcmp.eq.s32.totalorder %v513, %v527
    %vm585 = vcmp.eq.s32.totalorder %v514, %v527
    %vm586 = vcmp.eq.s32.totalorder %v512, %v528
    %vm587 = vcmp.eq.s32.totalorder %v513, %v528
    %vm588 = vcmp.eq.s32.totalorder %v514, %v528
    %vm589 = vcmp.eq.s32.totalorder %v512, %v529
    %vm590 = vcmp.eq.s32.totalorder %v513, %v529
    %vm591 = vcmp.eq.s32.totalorder %v514, %v529
    %vm592 = vcmp.eq.s32.totalorder %v512, %v530
    %vm593 = vcmp.eq.s32.totalorder %v513, %v530
    %vm594 = vcmp.eq.s32.totalorder %v514, %v530
    %vm595 = vcmp.eq.s32.totalorder %v512, %v531
    %vm596 = vcmp.eq.s32.totalorder %v513, %v531
    %vm597 = vcmp.eq.s32.totalorder %v514, %v531
    %vm598 = vcmp.eq.s32.totalorder %v512, %v532
    %vm599 = vcmp.eq.s32.totalorder %v513, %v532
    %vm600 = vcmp.eq.s32.totalorder %v514, %v532
    %vm601 = vcmp.eq.s32.totalorder %v512, %v533
    %vm602 = vcmp.eq.s32.totalorder %v513, %v533
    %vm603 = vcmp.eq.s32.totalorder %v514, %v533
    %vm604 = vcmp.eq.s32.totalorder %v512, %v534
    %vm605 = vcmp.eq.s32.totalorder %v513, %v534
    %vm606 = vcmp.eq.s32.totalorder %v514, %v534
    %vm607 = vcmp.eq.s32.totalorder %v512, %v535
    %vm608 = vcmp.eq.s32.totalorder %v513, %v535
    %vm609 = vcmp.eq.s32.totalorder %v514, %v535
    %vm610 = vcmp.eq.s32.totalorder %v512, %v536
    %vm611 = vcmp.eq.s32.totalorder %v513, %v536
    %vm612 = vcmp.eq.s32.totalorder %v514, %v536
    %vm613 = vcmp.eq.s32.totalorder %v512, %v537
    %vm614 = vcmp.eq.s32.totalorder %v513, %v537
    %vm615 = vcmp.eq.s32.totalorder %v514, %v537
    %vm616 = vcmp.eq.s32.totalorder %v512, %v538
    %vm617 = vcmp.eq.s32.totalorder %v513, %v538
    %vm618 = vcmp.eq.s32.totalorder %v514, %v538
    %vm619 = vcmp.eq.s32.totalorder %v512, %v539
    %vm620 = vcmp.eq.s32.totalorder %v513, %v539
    %vm621 = vcmp.eq.s32.totalorder %v514, %v539
    %vm622 = vcmp.eq.s32.totalorder %v512, %v540
    %vm623 = vcmp.eq.s32.totalorder %v513, %v540
    %vm624 = vcmp.eq.s32.totalorder %v514, %v540
    %vm625 = vcmp.eq.s32.totalorder %v512, %v541
    %vm626 = vcmp.eq.s32.totalorder %v513, %v541
    %vm627 = vcmp.eq.s32.totalorder %v514, %v541
    %vm628 = vcmp.eq.s32.totalorder %v512, %v542
    %vm629 = vcmp.eq.s32.totalorder %v513, %v542
    %vm630 = vcmp.eq.s32.totalorder %v514, %v542
    %vm631 = vcmp.eq.s32.totalorder %v512, %v543
    %vm632 = vcmp.eq.s32.totalorder %v513, %v543
    %vm633 = vcmp.eq.s32.totalorder %v514, %v543
    %vm634 = vcmp.eq.s32.totalorder %v512, %v544
    %vm635 = vcmp.eq.s32.totalorder %v513, %v544
    %vm636 = vcmp.eq.s32.totalorder %v514, %v544
    %vm637 = vcmp.eq.s32.totalorder %v512, %v545
    %vm638 = vcmp.eq.s32.totalorder %v513, %v545
    %vm639 = vcmp.eq.s32.totalorder %v514, %v545
    %vm640 = vcmp.eq.s32.totalorder %v512, %v546
    %vm641 = vcmp.eq.s32.totalorder %v513, %v546
    %vm642 = vcmp.eq.s32.totalorder %v514, %v546
    %v643 = vsel %vm547, 1, 0
    %v644 = vsel %vm548, 1, 0
    %v645 = vsel %vm549, 1, 0
    %v646 = vsel %vm550, 1, 0
    %v647 = vsel %vm551, 1, 0
    %v648 = vsel %vm552, 1, 0
    %v649 = vsel %vm553, 1, 0
    %v650 = vsel %vm554, 1, 0
    %v651 = vsel %vm555, 1, 0
    %v652 = vsel %vm556, 1, 0
    %v653 = vsel %vm557, 1, 0
    %v654 = vsel %vm558, 1, 0
    %v655 = vsel %vm559, 1, 0
    %v656 = vsel %vm560, 1, 0
    %v657 = vsel %vm561, 1, 0
    %v658 = vsel %vm562, 1, 0
    %v659 = vsel %vm563, 1, 0
    %v660 = vsel %vm564, 1, 0
    %v661 = vsel %vm565, 1, 0
    %v662 = vsel %vm566, 1, 0
    %v663 = vsel %vm567, 1, 0
    %v664 = vsel %vm568, 1, 0
    %v665 = vsel %vm569, 1, 0
    %v666 = vsel %vm570, 1, 0
    %v667 = vsel %vm571, 1, 0
    %v668 = vsel %vm572, 1, 0
    %v669 = vsel %vm573, 1, 0
    %v670 = vsel %vm574, 1, 0
    %v671 = vsel %vm575, 1, 0
    %v672 = vsel %vm576, 1, 0
    %v673 = vsel %vm577, 1, 0
    %v674 = vsel %vm578, 1, 0
    %v675 = vsel %vm579, 1, 0
    %v676 = vsel %vm580, 1, 0
    %v677 = vsel %vm581, 1, 0
    %v678 = vsel %vm582, 1, 0
    %v679 = vsel %vm583, 1, 0
    %v680 = vsel %vm584, 1, 0
    %v681 = vsel %vm585, 1, 0
    %v682 = vsel %vm586, 1, 0
    %v683 = vsel %vm587, 1, 0
    %v684 = vsel %vm588, 1, 0
    %v685 = vsel %vm589, 1, 0
    %v686 = vsel %vm590, 1, 0
    %v687 = vsel %vm591, 1, 0
    %v688 = vsel %vm592, 1, 0
    %v689 = vsel %vm593, 1, 0
    %v690 = vsel %vm594, 1, 0
    %v691 = vsel %vm595, 1, 0
    %v692 = vsel %vm596, 1, 0
    %v693 = vsel %vm597, 1, 0
    %v694 = vsel %vm598, 1, 0
    %v695 = vsel %vm599, 1, 0
    %v696 = vsel %vm600, 1, 0
    %v697 = vsel %vm601, 1, 0
    %v698 = vsel %vm602, 1, 0
    %v699 = vsel %vm603, 1, 0
    %v700 = vsel %vm604, 1, 0
    %v701 = vsel %vm605, 1, 0
    %v702 = vsel %vm606, 1, 0
    %v703 = vsel %vm607, 1, 0
    %v704 = vsel %vm608, 1, 0
    %v705 = vsel %vm609, 1, 0
    %v706 = vsel %vm610, 1, 0
    %v707 = vsel %vm611, 1, 0
    %v708 = vsel %vm612, 1, 0
    %v709 = vsel %vm613, 1, 0
    %v710 = vsel %vm614, 1, 0
    %v711 = vsel %vm615, 1, 0
    %v712 = vsel %vm616, 1, 0
    %v713 = vsel %vm617, 1, 0
    %v714 = vsel %vm618, 1, 0
    %v715 = vsel %vm619, 1, 0
    %v716 = vsel %vm620, 1, 0
    %v717 = vsel %vm621, 1, 0
    %v718 = vsel %vm622, 1, 0
    %v719 = vsel %vm623, 1, 0
    %v720 = vsel %vm624, 1, 0
    %v721 = vsel %vm625, 1, 0
    %v722 = vsel %vm626, 1, 0
    %v723 = vsel %vm627, 1, 0
    %v724 = vsel %vm628, 1, 0
    %v725 = vsel %vm629, 1, 0
    %v726 = vsel %vm630, 1, 0
    %v727 = vsel %vm631, 1, 0
    %v728 = vsel %vm632, 1, 0
    %v729 = vsel %vm633, 1, 0
    %v730 = vsel %vm634, 1, 0
    %v731 = vsel %vm635, 1, 0
    %v732 = vsel %vm636, 1, 0
    %v733 = vsel %vm637, 1, 0
    %v734 = vsel %vm638, 1, 0
    %v735 = vsel %vm639, 1, 0
    %v736 = vsel %vm640, 1, 0
    %v737 = vsel %vm641, 1, 0
    %v738 = vsel %vm642, 1, 0
    %v739 = vcvt.s32.f32 %v643
    %v740 = vcvt.s32.f32 %v644
    %v741 = vcvt.s32.f32 %v645
    %v742 = vcvt.s32.f32 %v646
    %v743 = vcvt.s32.f32 %v647
    %v744 = vcvt.s32.f32 %v648
    %v745 = vcvt.s32.f32 %v649
    %v746 = vcvt.s32.f32 %v650
    %v747 = vcvt.s32.f32 %v651
    %v748 = vcvt.s32.f32 %v652
    %v749 = vcvt.s32.f32 %v653
    %v750 = vcvt.s32.f32 %v654
    %v751 = vcvt.s32.f32 %v655
    %v752 = vcvt.s32.f32 %v656
    %v753 = vcvt.s32.f32 %v657
    %v754 = vcvt.s32.f32 %v658
    %v755 = vcvt.s32.f32 %v659
    %v756 = vcvt.s32.f32 %v660
    %v757 = vcvt.s32.f32 %v661
    %v758 = vcvt.s32.f32 %v662
    %v759 = vcvt.s32.f32 %v663
    %v760 = vcvt.s32.f32 %v664
    %v761 = vcvt.s32.f32 %v665
    %v762 = vcvt.s32.f32 %v666
    %v763 = vcvt.s32.f32 %v667
    %v764 = vcvt.s32.f32 %v668
    %v765 = vcvt.s32.f32 %v669
    %v766 = vcvt.s32.f32 %v670
    %v767 = vcvt.s32.f32 %v671
    %v768 = vcvt.s32.f32 %v672
    %v769 = vcvt.s32.f32 %v673
    %v770 = vcvt.s32.f32 %v674
    %v771 = vcvt.s32.f32 %v675
    %v772 = vcvt.s32.f32 %v676
    %v773 = vcvt.s32.f32 %v677
    %v774 = vcvt.s32.f32 %v678
    %v775 = vcvt.s32.f32 %v679
    %v776 = vcvt.s32.f32 %v680
    %v777 = vcvt.s32.f32 %v681
    %v778 = vcvt.s32.f32 %v682
    %v779 = vcvt.s32.f32 %v683
    %v780 = vcvt.s32.f32 %v684
    %v781 = vcvt.s32.f32 %v685
    %v782 = vcvt.s32.f32 %v686
    %v783 = vcvt.s32.f32 %v687
    %v784 = vcvt.s32.f32 %v688
    %v785 = vcvt.s32.f32 %v689
    %v786 = vcvt.s32.f32 %v690
    %v787 = vcvt.s32.f32 %v691
    %v788 = vcvt.s32.f32 %v692
    %v789 = vcvt.s32.f32 %v693
    %v790 = vcvt.s32.f32 %v694
    %v791 = vcvt.s32.f32 %v695
    %v792 = vcvt.s32.f32 %v696
    %v793 = vcvt.s32.f32 %v697
    %v794 = vcvt.s32.f32 %v698
    %v795 = vcvt.s32.f32 %v699
    %v796 = vcvt.s32.f32 %v700
    %v797 = vcvt.s32.f32 %v701
    %v798 = vcvt.s32.f32 %v702
    %v799 = vcvt.s32.f32 %v703
    %v800 = vcvt.s32.f32 %v704
    %v801 = vcvt.s32.f32 %v705
    %v802 = vcvt.s32.f32 %v706
    %v803 = vcvt.s32.f32 %v707
    %v804 = vcvt.s32.f32 %v708
    %v805 = vcvt.s32.f32 %v709
    %v806 = vcvt.s32.f32 %v710
    %v807 = vcvt.s32.f32 %v711
    %v808 = vcvt.s32.f32 %v712
    %v809 = vcvt.s32.f32 %v713
    %v810 = vcvt.s32.f32 %v714
    %v811 = vcvt.s32.f32 %v715
    %v812 = vcvt.s32.f32 %v716
    %v813 = vcvt.s32.f32 %v717
    %v814 = vcvt.s32.f32 %v718
    %v815 = vcvt.s32.f32 %v719
    %v816 = vcvt.s32.f32 %v720
    %v817 = vcvt.s32.f32 %v721
    %v818 = vcvt.s32.f32 %v722
    %v819 = vcvt.s32.f32 %v723
    %v820 = vcvt.s32.f32 %v724
    %v821 = vcvt.s32.f32 %v725
    %v822 = vcvt.s32.f32 %v726
    %v823 = vcvt.s32.f32 %v727
    %v824 = vcvt.s32.f32 %v728
    %v825 = vcvt.s32.f32 %v729
    %v826 = vcvt.s32.f32 %v730
    %v827 = vcvt.s32.f32 %v731
    %v828 = vcvt.s32.f32 %v732
    %v829 = vcvt.s32.f32 %v733
    %v830 = vcvt.s32.f32 %v734
    %v831 = vcvt.s32.f32 %v735
    %v832 = vcvt.s32.f32 %v736
    %v833 = vcvt.s32.f32 %v737
    %v834 = vcvt.s32.f32 %v738
    %835 = vmatpush.msra.mxu0 %v784
    %836 = vmatpush.msra.mxu0 %v781
    %837 = vmatpush.msra.mxu0 %v778
    %838 = vmatpush.msra.mxu0 %v775
    %839 = vmatpush.msra.mxu0 %v772
    %840 = vmatpush.msra.mxu0 %v769
    %841 = vmatpush.msra.mxu0 %v766
    %842 = vmatpush.msra.mxu0 %v763
    %843 = vmatpush.msra.mxu0 %v760
    %844 = vmatpush.msra.mxu0 %v757
    %845 = vmatpush.msra.mxu0 %v754
    %846 = vmatpush.msra.mxu0 %v751
    %847 = vmatpush.msra.mxu0 %v748
    %848 = vmatpush.msra.mxu0 %v745
    %849 = vmatpush.msra.mxu0 %v742
    %850 = vmatpush.msra.mxu0 %v739
    %851 = vmatmul.f32.gmra.mxu0 %v456
    %v852 = vpop.f32.mrf.mxu0
    %v853 = vadd.f32 0.0, %v852
    %854 = vdwg.mxu0
    %855 = vmatpush.msra.mxu0 %v832
    %856 = vmatpush.msra.mxu0 %v829
    %857 = vmatpush.msra.mxu0 %v826
    %858 = vmatpush.msra.mxu0 %v823
    %859 = vmatpush.msra.mxu0 %v820
    %860 = vmatpush.msra.mxu0 %v817
    %861 = vmatpush.msra.mxu0 %v814
    %862 = vmatpush.msra.mxu0 %v811
    %863 = vmatpush.msra.mxu0 %v808
    %864 = vmatpush.msra.mxu0 %v805
    %865 = vmatpush.msra.mxu0 %v802
    %866 = vmatpush.msra.mxu0 %v799
    %867 = vmatpush.msra.mxu0 %v796
    %868 = vmatpush.msra.mxu0 %v793
    %869 = vmatpush.msra.mxu0 %v790
    %870 = vmatpush.msra.mxu0 %v787
    %871 = vmatmul.f32.gmra.mxu0 %v476
    %v872 = vpop.f32.mrf.mxu0
    %v873 = vadd.f32 %v853, %v872
    %874 = vdwg.mxu0
    %875 = vmatpush.msra.mxu0 %v785
    %876 = vmatpush.msra.mxu0 %v782
    %877 = vmatpush.msra.mxu0 %v779
    %878 = vmatpush.msra.mxu0 %v776
    %879 = vmatpush.msra.mxu0 %v773
    %880 = vmatpush.msra.mxu0 %v770
    %881 = vmatpush.msra.mxu0 %v767
    %882 = vmatpush.msra.mxu0 %v764
    %883 = vmatpush.msra.mxu0 %v761
    %884 = vmatpush.msra.mxu0 %v758
    %885 = vmatpush.msra.mxu0 %v755
    %886 = vmatpush.msra.mxu0 %v752
    %887 = vmatpush.msra.mxu0 %v749
    %888 = vmatpush.msra.mxu0 %v746
    %889 = vmatpush.msra.mxu0 %v743
    %890 = vmatpush.msra.mxu0 %v740
    %891 = vmatmul.f32.gmra.mxu0 %v456
    %v892 = vpop.f32.mrf.mxu0
    %v893 = vadd.f32 0.0, %v892
    %894 = vdwg.mxu0
    %895 = vmatpush.msra.mxu0 %v833
    %896 = vmatpush.msra.mxu0 %v830
    %897 = vmatpush.msra.mxu0 %v827
    %898 = vmatpush.msra.mxu0 %v824
    %899 = vmatpush.msra.mxu0 %v821
    %900 = vmatpush.msra.mxu0 %v818
    %901 = vmatpush.msra.mxu0 %v815
    %902 = vmatpush.msra.mxu0 %v812
    %903 = vmatpush.msra.mxu0 %v809
    %904 = vmatpush.msra.mxu0 %v806
    %905 = vmatpush.msra.mxu0 %v803
    %906 = vmatpush.msra.mxu0 %v800
    %907 = vmatpush.msra.mxu0 %v797
    %908 = vmatpush.msra.mxu0 %v794
    %909 = vmatpush.msra.mxu0 %v791
    %910 = vmatpush.msra.mxu0 %v788
    %911 = vmatmul.f32.gmra.mxu0 %v476
    %v912 = vpop.f32.mrf.mxu0
    %v913 = vadd.f32 %v893, %v912
    %914 = vdwg.mxu0
    %915 = vmatpush.msra.mxu0 %v786
    %916 = vmatpush.msra.mxu0 %v783
    %917 = vmatpush.msra.mxu0 %v780
    %918 = vmatpush.msra.mxu0 %v777
    %919 = vmatpush.msra.mxu0 %v774
    %920 = vmatpush.msra.mxu0 %v771
    %921 = vmatpush.msra.mxu0 %v768
    %922 = vmatpush.msra.mxu0 %v765
    %923 = vmatpush.msra.mxu0 %v762
    %924 = vmatpush.msra.mxu0 %v759
    %925 = vmatpush.msra.mxu0 %v756
    %926 = vmatpush.msra.mxu0 %v753
    %927 = vmatpush.msra.mxu0 %v750
    %928 = vmatpush.msra.mxu0 %v747
    %929 = vmatpush.msra.mxu0 %v744
    %930 = vmatpush.msra.mxu0 %v741
    %931 = vmatmul.f32.gmra.mxu0 %v456
    %v932 = vpop.f32.mrf.mxu0
    %v933 = vadd.f32 0.0, %v932
    %934 = vdwg.mxu0
    %935 = vmatpush.msra.mxu0 %v834
    %936 = vmatpush.msra.mxu0 %v831
    %937 = vmatpush.msra.mxu0 %v828
    %938 = vmatpush.msra.mxu0 %v825
    %939 = vmatpush.msra.mxu0 %v822
    %940 = vmatpush.msra.mxu0 %v819
    %941 = vmatpush.msra.mxu0 %v816
    %942 = vmatpush.msra.mxu0 %v813
    %943 = vmatpush.msra.mxu0 %v810
    %944 = vmatpush.msra.mxu0 %v807
    %945 = vmatpush.msra.mxu0 %v804
    %946 = vmatpush.msra.mxu0 %v801
    %947 = vmatpush.msra.mxu0 %v798
    %948 = vmatpush.msra.mxu0 %v795
    %949 = vmatpush.msra.mxu0 %v792
    %950 = vmatpush.msra.mxu0 %v789
    %951 = vmatmul.f32.gmra.mxu0 %v476
    %v952 = vpop.f32.mrf.mxu0
    %v953 = vadd.f32 %v933, %v952
    %954 = vdwg.mxu0
    %vm955 = vcmp.eq.s32.totalorder %v512, 0
    %vm956 = vcmp.eq.s32.totalorder %v513, 0
    %vm957 = vcmp.eq.s32.totalorder %v514, 0
    %v958 = vsel %vm955, %v405, %v873
    %v959 = vsel %vm956, %v405, %v913
    %v960 = vsel %vm957, %v405, %v953
    %v961 = vmul.f32 %v958, 14.285714
    %v962 = vmul.f32 %v959, 14.285714
    %v963 = vmul.f32 %v960, 14.285714
    %964 = vst [vmem:[#allocation9] sm:$0xff] %v961
    %965 = vst [vmem:[#allocation9 + $0x8] sm:$0xff] %v962
    %vm966 = vcmask 7168
    %967 = vst.msk [vmem:[#allocation9 + $0x10] sm:$0xff] %vm966, %v963
    %s968 = sld [smem:[#allocation2]]
    %v969 = vstv %s968
    %v970 = vadd.s32 %v479, %v969
    %vm971 = vcmp.eq.s32.totalorder %v512, %v970
    %vm972 = vcmp.eq.s32.totalorder %v513, %v970
    %v973 = vsel %vm971, 1, 0
    %v974 = vsel %vm972, 1, 0
    %v975 = vcvt.s32.f32 %v973
    %v976 = vcvt.s32.f32 %v974
    %977 = vxpose.xlu0.b32.start [1/16] %v402, 128
    %978 = vxpose.xlu0.b32.cont [2/16] 0.0, 128
    %979 = vxpose.xlu0.b32.cont [3/16] 0.0, 128
    %980 = vxpose.xlu0.b32.cont [4/16] 0.0, 128
    %981 = vxpose.xlu0.b32.cont [5/16] 0.0, 128
    %982 = vxpose.xlu0.b32.cont [6/16] 0.0, 128
    %983 = vxpose.xlu0.b32.cont [7/16] 0.0, 128
    %984 = vxpose.xlu0.b32.cont [8/16] 0.0, 128
    %985 = vxpose.xlu0.b32.cont [9/16] 0.0, 128
    %986 = vxpose.xlu0.b32.cont [10/16] 0.0, 128
    %987 = vxpose.xlu0.b32.cont [11/16] 0.0, 128
    %988 = vxpose.xlu0.b32.cont [12/16] 0.0, 128
    %989 = vxpose.xlu0.b32.cont [13/16] 0.0, 128
    %990 = vxpose.xlu0.b32.cont [14/16] 0.0, 128
    %991 = vxpose.xlu0.b32.cont [15/16] 0.0, 128
    %992 = vxpose.xlu0.b32.end [16/16] 0.0, 128
    %v993 = vpop.trf.xlu0
    %v994 = vpop.trf.xlu0
    %v995 = vpop.trf.xlu0
    %v996 = vpop.trf.xlu0
    %v997 = vpop.trf.xlu0
    %v998 = vpop.trf.xlu0
    %v999 = vpop.trf.xlu0
    %v1000 = vpop.trf.xlu0
    %v1001 = vpop.trf.xlu0
    %v1002 = vpop.trf.xlu0
    %v1003 = vpop.trf.xlu0
    %v1004 = vpop.trf.xlu0
    %v1005 = vpop.trf.xlu0
    %v1006 = vpop.trf.xlu0
    %v1007 = vpop.trf.xlu0
    %v1008 = vpop.trf.xlu0
    %vm1009 = vcmask 64512
    %v1011 = vsel %vm1009, %v993, 0
    %v1014 = vsel %vm1009, %v994, 0
    %v1017 = vsel %vm1009, %v995, 0
    %v1020 = vsel %vm1009, %v996, 0
    %v1023 = vsel %vm1009, %v997, 0
    %v1026 = vsel %vm1009, %v998, 0
    %v1029 = vsel %vm1009, %v999, 0
    %v1032 = vsel %vm1009, %v1000, 0
    %v1035 = vsel %vm1009, %v1001, 0
    %v1038 = vsel %vm1009, %v1002, 0
    %v1041 = vsel %vm1009, %v1003, 0
    %v1044 = vsel %vm1009, %v1004, 0
    %v1047 = vsel %vm1009, %v1005, 0
    %v1050 = vsel %vm1009, %v1006, 0
    %v1053 = vsel %vm1009, %v1007, 0
    %v1056 = vsel %vm1009, %v1008, 0
    %1058 = vmatpush.msra.mxu0 0.0
    %1059 = vmatpush.msra.mxu0 0.0
    %1060 = vmatpush.msra.mxu0 0.0
    %1061 = vmatpush.msra.mxu0 0.0
    %1062 = vmatpush.msra.mxu0 0.0
    %1063 = vmatpush.msra.mxu0 0.0
    %1064 = vmatpush.msra.mxu0 0.0
    %1065 = vmatpush.msra.mxu0 0.0
    %1066 = vmatpush.msra.mxu0 0.0
    %1067 = vmatpush.msra.mxu0 0.0
    %1068 = vmatpush.msra.mxu0 0.0
    %1069 = vmatpush.msra.mxu0 0.0
    %1070 = vmatpush.msra.mxu0 0.0
    %1071 = vmatpush.msra.mxu0 0.0
    %1072 = vmatpush.msra.mxu0 0.0
    %1073 = vmatpush.msra.mxu0 %v975
    %1074 = vmatmul.f32.gmra.mxu0 %v1011
    %v1075 = vpop.f32.mrf.mxu0
    %v1076 = vadd.f32 0.0, %v1075
    %1077 = vmatmul.f32.gmra.mxu0 %v1014
    %v1078 = vpop.f32.mrf.mxu0
    %v1079 = vadd.f32 0.0, %v1078
    %1080 = vmatmul.f32.gmra.mxu0 %v1017
    %v1081 = vpop.f32.mrf.mxu0
    %v1082 = vadd.f32 0.0, %v1081
    %1083 = vmatmul.f32.gmra.mxu0 %v1020
    %v1084 = vpop.f32.mrf.mxu0
    %v1085 = vadd.f32 0.0, %v1084
    %1086 = vmatmul.f32.gmra.mxu0 %v1023
    %v1087 = vpop.f32.mrf.mxu0
    %v1088 = vadd.f32 0.0, %v1087
    %1089 = vmatmul.f32.gmra.mxu0 %v1026
    %v1090 = vpop.f32.mrf.mxu0
    %v1091 = vadd.f32 0.0, %v1090
    %1092 = vmatmul.f32.gmra.mxu0 %v1029
    %v1093 = vpop.f32.mrf.mxu0
    %v1094 = vadd.f32 0.0, %v1093
    %1095 = vmatmul.f32.gmra.mxu0 %v1032
    %v1096 = vpop.f32.mrf.mxu0
    %v1097 = vadd.f32 0.0, %v1096
    %1098 = vmatmul.f32.gmra.mxu0 %v1035
    %v1099 = vpop.f32.mrf.mxu0
    %v1100 = vadd.f32 0.0, %v1099
    %1101 = vmatmul.f32.gmra.mxu0 %v1038
    %v1102 = vpop.f32.mrf.mxu0
    %v1103 = vadd.f32 0.0, %v1102
    %1104 = vmatmul.f32.gmra.mxu0 %v1041
    %v1105 = vpop.f32.mrf.mxu0
    %v1106 = vadd.f32 0.0, %v1105
    %1107 = vmatmul.f32.gmra.mxu0 %v1044
    %v1108 = vpop.f32.mrf.mxu0
    %v1109 = vadd.f32 0.0, %v1108
    %1110 = vmatmul.f32.gmra.mxu0 %v1047
    %v1111 = vpop.f32.mrf.mxu0
    %v1112 = vadd.f32 0.0, %v1111
    %1113 = vmatmul.f32.gmra.mxu0 %v1050
    %v1114 = vpop.f32.mrf.mxu0
    %v1115 = vadd.f32 0.0, %v1114
    %1116 = vmatmul.f32.gmra.mxu0 %v1053
    %v1117 = vpop.f32.mrf.mxu0
    %v1118 = vadd.f32 0.0, %v1117
    %1119 = vmatmul.f32.gmra.mxu0 %v1056
    %v1120 = vpop.f32.mrf.mxu0
    %v1121 = vadd.f32 0.0, %v1120
    %1122 = vdwg.mxu0
    %1123 = vmatpush.msra.mxu0 0.0
    %1124 = vmatpush.msra.mxu0 0.0
    %1125 = vmatpush.msra.mxu0 0.0
    %1126 = vmatpush.msra.mxu0 0.0
    %1127 = vmatpush.msra.mxu0 0.0
    %1128 = vmatpush.msra.mxu0 0.0
    %1129 = vmatpush.msra.mxu0 0.0
    %1130 = vmatpush.msra.mxu0 0.0
    %1131 = vmatpush.msra.mxu0 0.0
    %1132 = vmatpush.msra.mxu0 0.0
    %1133 = vmatpush.msra.mxu0 0.0
    %1134 = vmatpush.msra.mxu0 0.0
    %1135 = vmatpush.msra.mxu0 0.0
    %1136 = vmatpush.msra.mxu0 0.0
    %1137 = vmatpush.msra.mxu0 0.0
    %1138 = vmatpush.msra.mxu0 %v976
    %1139 = vmatmul.f32.gmra.mxu0 %v1011
    %v1140 = vpop.f32.mrf.mxu0
    %v1141 = vadd.f32 0.0, %v1140
    %1142 = vmatmul.f32.gmra.mxu0 %v1014
    %v1143 = vpop.f32.mrf.mxu0
    %v1144 = vadd.f32 0.0, %v1143
    %1145 = vmatmul.f32.gmra.mxu0 %v1017
    %v1146 = vpop.f32.mrf.mxu0
    %v1147 = vadd.f32 0.0, %v1146
    %1148 = vmatmul.f32.gmra.mxu0 %v1020
    %v1149 = vpop.f32.mrf.mxu0
    %v1150 = vadd.f32 0.0, %v1149
    %1151 = vmatmul.f32.gmra.mxu0 %v1023
    %v1152 = vpop.f32.mrf.mxu0
    %v1153 = vadd.f32 0.0, %v1152
    %1154 = vmatmul.f32.gmra.mxu0 %v1026
    %v1155 = vpop.f32.mrf.mxu0
    %v1156 = vadd.f32 0.0, %v1155
    %1157 = vmatmul.f32.gmra.mxu0 %v1029
    %v1158 = vpop.f32.mrf.mxu0
    %v1159 = vadd.f32 0.0, %v1158
    %1160 = vmatmul.f32.gmra.mxu0 %v1032
    %v1161 = vpop.f32.mrf.mxu0
    %v1162 = vadd.f32 0.0, %v1161
    %1163 = vmatmul.f32.gmra.mxu0 %v1035
    %v1164 = vpop.f32.mrf.mxu0
    %v1165 = vadd.f32 0.0, %v1164
    %1166 = vmatmul.f32.gmra.mxu0 %v1038
    %v1167 = vpop.f32.mrf.mxu0
    %v1168 = vadd.f32 0.0, %v1167
    %1169 = vmatmul.f32.gmra.mxu0 %v1041
    %v1170 = vpop.f32.mrf.mxu0
    %v1171 = vadd.f32 0.0, %v1170
    %1172 = vmatmul.f32.gmra.mxu0 %v1044
    %v1173 = vpop.f32.mrf.mxu0
    %v1174 = vadd.f32 0.0, %v1173
    %1175 = vmatmul.f32.gmra.mxu0 %v1047
    %v1176 = vpop.f32.mrf.mxu0
    %v1177 = vadd.f32 0.0, %v1176
    %1178 = vmatmul.f32.gmra.mxu0 %v1050
    %v1179 = vpop.f32.mrf.mxu0
    %v1180 = vadd.f32 0.0, %v1179
    %1181 = vmatmul.f32.gmra.mxu0 %v1053
    %v1182 = vpop.f32.mrf.mxu0
    %v1183 = vadd.f32 0.0, %v1182
    %1184 = vmatmul.f32.gmra.mxu0 %v1056
    %v1185 = vpop.f32.mrf.mxu0
    %v1186 = vadd.f32 0.0, %v1185
    %1187 = vdwg.mxu0
    %vm1188 = vcmp.ge.s32.totalorder %v512, %v969
    %vm1189 = vcmp.ge.s32.totalorder %v513, %v969
    %s1190 = sadd.s32 %s968, 8
    %v1191 = vstv %s1190
    %vm1192 = vcmp.lt.s32.totalorder %v512, %v1191
    %vm1193 = vcmp.lt.s32.totalorder %v513, %v1191
    %vm1194 = vmand %vm1188, %vm1192
    %vm1195 = vmand %vm1189, %vm1193
    %v1196 = vld [vmem:[%s7] sm:$0xff]
    %v1197 = vld [vmem:[%s7 + $0x8] sm:$0xff]
    %v1198 = vld [vmem:[%s7 + $0x10] sm:$0xff]
    %v1199 = vld [vmem:[%s7 + $0x18] sm:$0xff]
    %v1200 = vld [vmem:[%s7 + $0x20] sm:$0xff]
    %v1201 = vld [vmem:[%s7 + $0x28] sm:$0xff]
    %v1202 = vld [vmem:[%s7 + $0x30] sm:$0xff]
    %v1203 = vld [vmem:[%s7 + $0x38] sm:$0xff]
    %v1204 = vld [vmem:[%s7 + $0x40] sm:$0xff]
    %v1205 = vld [vmem:[%s7 + $0x48] sm:$0xff]
    %v1206 = vld [vmem:[%s7 + $0x50] sm:$0xff]
    %v1207 = vld [vmem:[%s7 + $0x58] sm:$0xff]
    %v1208 = vld [vmem:[%s7 + $0x60] sm:$0xff]
    %v1209 = vld [vmem:[%s7 + $0x68] sm:$0xff]
    %v1210 = vld [vmem:[%s7 + $0x70] sm:$0xff]
    %v1211 = vld [vmem:[%s7 + $0x78] sm:$0xff]
    %v1212 = vld [vmem:[%s7 + $0x80] sm:$0xff]
    %v1213 = vld [vmem:[%s7 + $0x88] sm:$0xff]
    %v1214 = vld [vmem:[%s7 + $0x90] sm:$0xff]
    %v1215 = vld [vmem:[%s7 + $0x98] sm:$0xff]
    %v1216 = vld [vmem:[%s7 + $0xa0] sm:$0xff]
    %v1217 = vld [vmem:[%s7 + $0xa8] sm:$0xff]
    %v1218 = vld [vmem:[%s7 + $0xb0] sm:$0xff]
    %v1219 = vld [vmem:[%s7 + $0xb8] sm:$0xff]
    %v1220 = vld [vmem:[%s7 + $0xc0] sm:$0xff]
    %v1221 = vld [vmem:[%s7 + $0xc8] sm:$0xff]
    %v1222 = vld [vmem:[%s7 + $0xd0] sm:$0xff]
    %v1223 = vld [vmem:[%s7 + $0xd8] sm:$0xff]
    %v1224 = vld [vmem:[%s7 + $0xe0] sm:$0xff]
    %v1225 = vld [vmem:[%s7 + $0xe8] sm:$0xff]
    %v1226 = vld [vmem:[%s7 + $0xf0] sm:$0xff]
    %v1227 = vld [vmem:[%s7 + $0xf8] sm:$0xff]
    %v1228 = vsel %vm1194, %v1076, %v1196
    %v1229 = vsel %vm1195, %v1141, %v1197
    %v1230 = vsel %vm1194, %v1079, %v1198
    %v1231 = vsel %vm1195, %v1144, %v1199
    %v1232 = vsel %vm1194, %v1082, %v1200
    %v1233 = vsel %vm1195, %v1147, %v1201
    %v1234 = vsel %vm1194, %v1085, %v1202
    %v1235 = vsel %vm1195, %v1150, %v1203
    %v1236 = vsel %vm1194, %v1088, %v1204
    %v1237 = vsel %vm1195, %v1153, %v1205
    %v1238 = vsel %vm1194, %v1091, %v1206
    %v1239 = vsel %vm1195, %v1156, %v1207
    %v1240 = vsel %vm1194, %v1094, %v1208
    %v1241 = vsel %vm1195, %v1159, %v1209
    %v1242 = vsel %vm1194, %v1097, %v1210
    %v1243 = vsel %vm1195, %v1162, %v1211
    %v1244 = vsel %vm1194, %v1100, %v1212
    %v1245 = vsel %vm1195, %v1165, %v1213
    %v1246 = vsel %vm1194, %v1103, %v1214
    %v1247 = vsel %vm1195, %v1168, %v1215
    %v1248 = vsel %vm1194, %v1106, %v1216
    %v1249 = vsel %vm1195, %v1171, %v1217
    %v1250 = vsel %vm1194, %v1109, %v1218
    %v1251 = vsel %vm1195, %v1174, %v1219
    %v1252 = vsel %vm1194, %v1112, %v1220
    %v1253 = vsel %vm1195, %v1177, %v1221
    %v1254 = vsel %vm1194, %v1115, %v1222
    %v1255 = vsel %vm1195, %v1180, %v1223
    %v1256 = vsel %vm1194, %v1118, %v1224
    %v1257 = vsel %vm1195, %v1183, %v1225
    %v1258 = vsel %vm1194, %v1121, %v1226
    %v1259 = vsel %vm1195, %v1186, %v1227
    %1260 = vst [vmem:[%s11] sm:$0xff] %v1228
    %1261 = vst [vmem:[%s11 + $0x8] sm:$0xff] %v1229
    %1262 = vst [vmem:[%s11 + $0x10] sm:$0xff] %v1230
    %1263 = vst [vmem:[%s11 + $0x18] sm:$0xff] %v1231
    %1264 = vst [vmem:[%s11 + $0x20] sm:$0xff] %v1232
    %1265 = vst [vmem:[%s11 + $0x28] sm:$0xff] %v1233
    %1266 = vst [vmem:[%s11 + $0x30] sm:$0xff] %v1234
    %1267 = vst [vmem:[%s11 + $0x38] sm:$0xff] %v1235
    %1268 = vst [vmem:[%s11 + $0x40] sm:$0xff] %v1236
    %1269 = vst [vmem:[%s11 + $0x48] sm:$0xff] %v1237
    %1270 = vst [vmem:[%s11 + $0x50] sm:$0xff] %v1238
    %1271 = vst [vmem:[%s11 + $0x58] sm:$0xff] %v1239
    %1272 = vst [vmem:[%s11 + $0x60] sm:$0xff] %v1240
    %1273 = vst [vmem:[%s11 + $0x68] sm:$0xff] %v1241
    %1274 = vst [vmem:[%s11 + $0x70] sm:$0xff] %v1242
    %1275 = vst [vmem:[%s11 + $0x78] sm:$0xff] %v1243
    %1276 = vst [vmem:[%s11 + $0x80] sm:$0xff] %v1244
    %1277 = vst [vmem:[%s11 + $0x88] sm:$0xff] %v1245
    %1278 = vst [vmem:[%s11 + $0x90] sm:$0xff] %v1246
    %1279 = vst [vmem:[%s11 + $0x98] sm:$0xff] %v1247
    %1280 = vst [vmem:[%s11 + $0xa0] sm:$0xff] %v1248
    %1281 = vst [vmem:[%s11 + $0xa8] sm:$0xff] %v1249
    %1282 = vst [vmem:[%s11 + $0xb0] sm:$0xff] %v1250
    %1283 = vst [vmem:[%s11 + $0xb8] sm:$0xff] %v1251
    %1284 = vst [vmem:[%s11 + $0xc0] sm:$0xff] %v1252
    %1285 = vst [vmem:[%s11 + $0xc8] sm:$0xff] %v1253
    %1286 = vst [vmem:[%s11 + $0xd0] sm:$0xff] %v1254
    %1287 = vst [vmem:[%s11 + $0xd8] sm:$0xff] %v1255
    %1288 = vst [vmem:[%s11 + $0xe0] sm:$0xff] %v1256
    %1289 = vst [vmem:[%s11 + $0xe8] sm:$0xff] %v1257
    %1290 = vst [vmem:[%s11 + $0xf0] sm:$0xff] %v1258
    %1291 = vst [vmem:[%s11 + $0xf8] sm:$0xff] %v1259
    // Predicated region
    $region38: #{moco_forward.1} parent=1 // pred_check
      _
    $region39: #{moco_forward.1} parent=1 // pred_check_branch
      %1293 = sbr.rel (0) target = $region41
    $region40: #{moco_forward.1} parent=1 // pred_region
      %1295 = vsyncadd [#allocation5], 0
      %s1296 = sshll.u32 [#allocation6], 4
      %s1297 = int_to_ptr.vmem [resolvable:$true] %s1296
      %s1298 = sshll.u32 %s8, 4
      %s1299 = int_to_ptr.hbm [resolvable:$true] %s1298
      %1304 = dma.vmem_to_hbm [thread:$0]  %s1297, 4096, %s1299, [#allocation5], 128, 128, 8
    $region41: #{moco_forward.1} parent=1 // pred_fallthru
      _
    // Predicated region
    $region42: #{moco_forward.1} parent=1 // pred_check
      _
    $region43: #{moco_forward.1} parent=1 // pred_check_branch
      %1306 = sbr.rel (0) target = $region45
    $region44: #{moco_forward.1} parent=1 // pred_region
      %1308 = vsyncadd [#allocation8], 0
      %s1310 = sshll.u32 [#allocation7], 4
      %s1311 = int_to_ptr.vmem [resolvable:$true] %s1310
      %s1312 = sshll.u32 %s9, 4
      %s1313 = int_to_ptr.hbm [resolvable:$true] %s1312
      %1315 = dma.vmem_to_hbm [thread:$0]  %s1311, 16, %s1313, [#allocation8]
    $region45: #{moco_forward.1} parent=1 // pred_fallthru
      _
    // Predicated region
    $region46: #{moco_forward.1} parent=1 // pred_check
      _
    $region47: #{moco_forward.1} parent=1 // pred_check_branch
      %1317 = sbr.rel (0) target = $region49
    $region48: #{moco_forward.1} parent=1 // pred_region
      %1319 = vsyncadd [#allocation8], 0
      %s1321 = sshll.u32 [#allocation9], 4
      %s1322 = int_to_ptr.vmem [resolvable:$true] %s1321
      %s1323 = sshll.u32 %s10, 4
      %s1324 = int_to_ptr.hbm [resolvable:$true] %s1323
      %1326 = dma.vmem_to_hbm [thread:$0]  %s1322, 384, %s1324, [#allocation8]
    $region49: #{moco_forward.1} parent=1 // pred_fallthru
      _
    // Predicated region
    $region50: #{moco_forward.1} parent=1 // pred_check
      _
    $region51: #{moco_forward.1} parent=1 // pred_check_branch
      %1328 = sbr.rel (0) target = $region53
    $region52: #{moco_forward.1} parent=1 // pred_region
      _
    $region53: #{moco_forward.1} parent=1 // pred_fallthru
      _
    // Predicated region
    $region54: #{moco_forward.1} parent=1 // pred_check
      _
    $region55: #{moco_forward.1} parent=1 // pred_check_branch
      %1330 = sbr.rel (0) target = $region57
    $region56: #{moco_forward.1} parent=1 // pred_region
      %1332 = dma.done [#allocation5], 4096
    $region57: #{moco_forward.1} parent=1 // pred_fallthru
      _
    // Predicated region
    $region58: #{moco_forward.1} parent=1 // pred_check
      _
    $region59: #{moco_forward.1} parent=1 // pred_check_branch
      %1334 = sbr.rel (0) target = $region61
    $region60: #{moco_forward.1} parent=1 // pred_region
      %1336 = dma.done [#allocation8], 16
    $region61: #{moco_forward.1} parent=1 // pred_fallthru
      _
    // Predicated region
    $region62: #{moco_forward.1} parent=1 // pred_check
      _
    $region63: #{moco_forward.1} parent=1 // pred_check_branch
      %1338 = sbr.rel (0) target = $region65
    $region64: #{moco_forward.1} parent=1 // pred_region
      %1340 = dma.done [#allocation8], 384
    $region65: #{moco_forward.1} parent=1 // pred_fallthru
      _
    // Predicated region
    $region66: #{moco_forward.1} parent=1 // pred_check
      _
    $region67: #{moco_forward.1} parent=1 // pred_check_branch
      %1342 = sbr.rel (0) target = $region69
    $region68: #{moco_forward.1} parent=1 // pred_region
      _
    $region69: #{moco_forward.1} parent=1 // pred_fallthru
      _
    %1343 = vsyncpa [#allocation4], 1
    %1344 = vsyncpa [#allocation5], 1
    %1345 = vsyncpa [#allocation8], 1

</llo_original>
